<compile_context>
chip_gen: v6e
topology: v6e:2x2x1
jax: 0.10.0
libtpu: 0.0.40
codegen_flags: <defaults>
</compile_context>

<pallas_src>
import jax
import jax.numpy as jnp
from jax import lax
from jax.experimental import pallas as pl
from jax.experimental.pallas import tpu as pltpu
import numpy as np


def _round_up(n, m):
    return ((n + m - 1) // m) * m


def _conv_as_matrix_np(w, b, h, wdim, stride, padding):
    """Fold Conv2d(w, b, stride, padding) over an (h, wdim) input into a dense
    matrix + bias row acting on channel-major flattened activations:

        conv(z).reshape(N, Cout*Ho*Wo) == z.reshape(N, Cin*h*wdim) @ M + bvec

    Built exactly in numpy (one nonzero term per (q, p) pair). Only viable for
    tiny spatial extents (fully unrolled Toeplitz operator).
    """
    w_np = np.asarray(w, dtype=np.float32)
    cout, cin, k, _ = w_np.shape
    ho = (h + 2 * padding - k) // stride + 1
    wo = (wdim + 2 * padding - k) // stride + 1
    q_dim, p_dim = h * wdim, ho * wo

    gather = np.zeros((q_dim, k * k, p_dim), dtype=np.float32)
    for oh in range(ho):
        for ow in range(wo):
            for kh in range(k):
                for kw in range(k):
                    ih = oh * stride + kh - padding
                    iw = ow * stride + kw - padding
                    if 0 <= ih < h and 0 <= iw < wdim:
                        gather[ih * wdim + iw, kh * k + kw, oh * wo + ow] = 1.0

    m = np.einsum("ock,qkp->cqop", w_np.reshape(cout, cin, k * k), gather)
    m = m.reshape(cin * q_dim, cout * p_dim)
    bvec = np.repeat(np.asarray(b, dtype=np.float32), p_dim)[None, :]
    return m, bvec, (ho, wo)


def _pad_to_np(a, rows, cols):
    return np.pad(a, ((0, rows - a.shape[0]), (0, cols - a.shape[1])))


def fold_model_params(params, x_shape):
    """One-time weight preprocessing.

    conv1 (1x1, 1 input channel, padding=1) -> per-lane scale/offset rows
    acting on 3 replicated copies of the flattened input; its padding ring is
    a constant relu(b1[c]) folded into the conv2 bias.  conv2/conv3 -> dense
    bf16 Toeplitz matrices.  The whole net becomes:
        y = relu(relu(relu(tile(x,3)*w1r + b1r) @ M2 + b2v) @ M3 + b3v)
    All padded lanes/rows are zero so ReLU(0)=0 keeps padding inert.
    """
    (w1, b1), (w2, b2), (w3, b3) = params
    _, cin0, h, wdim = x_shape
    assert cin0 == 1 and w1.shape[1] == 1 and w1.shape[2] == 1, "conv1 must be 1x1 on 1 channel"

    c1 = w1.shape[0]
    q_in = h * wdim                                   # flattened input pixels
    assert q_in % 128 == 0 and (c1 * q_in) % 128 == 0, "lane-dense fast path"
    h1, w1s = h + 2, wdim + 2                         # conv1 out spatial (k=1,s=1,p=1)
    q1 = h1 * w1s

    w1_np = np.asarray(w1, np.float32).reshape(c1)
    b1_np = np.asarray(b1, np.float32)
    w1_row = np.repeat(w1_np, q_in)[None, :]          # (1, c1*q_in)
    b1_row = np.repeat(b1_np, q_in)[None, :]          # (1, c1*q_in)

    # conv2 Toeplitz over the full (c1, h1, w1s) conv1-output grid.
    m2_full, bv2, (h2, w2s) = _conv_as_matrix_np(w2, b2, h1, w1s, stride=2, padding=1)

    # Split conv1-output rows: interior (data-dependent) vs. padding ring
    # (constant relu(b1[c]) -> folded into the conv2 bias).
    int_rows = np.array([c * q1 + (r + 1) * w1s + (col + 1)
                         for c in range(c1) for r in range(h) for col in range(wdim)])
    is_int = np.zeros(c1 * q1, dtype=bool)
    is_int[int_rows] = True
    bor_rows = np.nonzero(~is_int)[0]
    bor_vals = np.maximum(np.repeat(b1_np, q1), 0.0)[bor_rows]
    m2 = m2_full[int_rows, :]                                   # (c1*q_in, d2)
    bv2 = bv2 + bor_vals[None, :] @ m2_full[bor_rows, :]

    # conv3 Toeplitz over the (h2, w2s) conv2-output grid.
    m3, bv3, (h3, w3s) = _conv_as_matrix_np(w3, b3, h2, w2s, stride=2, padding=1)

    d1 = c1 * q_in
    d2, d3 = m2.shape[1], m3.shape[1]
    d2p, d3p = _round_up(d2, 128), _round_up(d3, 128)

    folded = (
        jnp.asarray(w1_row),                                        # f32  (1, d1)
        jnp.asarray(b1_row),                                        # f32  (1, d1)
        jnp.asarray(_pad_to_np(m2, d1, d2p), dtype=jnp.bfloat16),   # bf16 (d1, d2p)
        jnp.asarray(_pad_to_np(bv2, 1, d2p)),                       # f32  (1, d2p)
        jnp.asarray(_pad_to_np(m3, d2p, d3p), dtype=jnp.bfloat16),  # bf16 (d2p, d3p)
        jnp.asarray(_pad_to_np(bv3, 1, d3p)),                       # f32  (1, d3p)
    )
    meta = dict(c1=c1, q_in=q_in, d3=d3, d3p=d3p,
                cout=w3.shape[0], out_hw=(h3, w3s))
    return folded, meta


def _make_kernel(num_l1_channels):
    def kernel(x_ref, w1_ref, b1_ref, m2_ref, b2_ref, m3_ref, b3_ref, o_ref):
        # conv1 (degenerate 1x1) + ReLU: pure VPU work in f32, no matmul.
        xv = x_ref[...]
        u = jnp.concatenate([xv] * num_l1_channels, axis=-1)
        u = jnp.maximum(u * w1_ref[...] + b1_ref[...], 0.0)
        # conv2 + ReLU: bf16 MXU operands, f32 accumulation, f32 bias/ReLU.
        z = jnp.dot(u.astype(jnp.bfloat16), m2_ref[...],
                    preferred_element_type=jnp.float32)
        z = jnp.maximum(z + b2_ref[...], 0.0)
        # conv3 + ReLU.
        z = jnp.dot(z.astype(jnp.bfloat16), m3_ref[...],
                    preferred_element_type=jnp.float32)
        o_ref[...] = jnp.maximum(z + b3_ref[...], 0.0).astype(o_ref.dtype)
    return kernel


def make_model_forward(folded, meta):
    w1r, b1r, m2, bv2, m3, bv3 = folded
    q_in, d3p = meta["q_in"], meta["d3p"]
    d1, d2p = m2.shape
    kernel = _make_kernel(meta["c1"])
    weight_bytes = sum(int(a.size) * a.dtype.itemsize for a in folded)

    @jax.jit
    def forward(x):
        n = x.shape[0]
        # Fill the MXU when the batch allows: up to 128 LHS rows per grid step.
        bt = min(128, _round_up(n, 8))
        n_pad = _round_up(n, bt)
        x_flat = jnp.pad(x.reshape(n, -1).astype(jnp.float32),
                         ((0, n_pad - n), (0, 0)))

        flops = 2 * n_pad * (d1 * d2p + d2p * d3p)
        bytes_accessed = weight_bytes + n_pad * q_in * 4 + n_pad * d3p * 4

        out = pl.pallas_call(
            kernel,
            out_shape=jax.ShapeDtypeStruct((n_pad, d3p), jnp.float32),
            grid_spec=pltpu.PrefetchScalarGridSpec(
                num_scalar_prefetch=0,
                grid=(n_pad // bt,),
                in_specs=[
                    pl.BlockSpec((bt, q_in), lambda i: (i, 0)),
                    # Grid-invariant weights/biases (index_map -> (0, 0)).
                    # Total residency ~1 MiB bf16, so even double-buffered they
                    # sit far below every generation's scoped-VMEM limit.
                    pl.BlockSpec(w1r.shape, lambda i: (0, 0)),
                    pl.BlockSpec(b1r.shape, lambda i: (0, 0)),
                    pl.BlockSpec(m2.shape, lambda i: (0, 0)),
                    pl.BlockSpec(bv2.shape, lambda i: (0, 0)),
                    pl.BlockSpec(m3.shape, lambda i: (0, 0)),
                    pl.BlockSpec(bv3.shape, lambda i: (0, 0)),
                ],
                out_specs=pl.BlockSpec((bt, d3p), lambda i: (i, 0)),
            ),
            compiler_params=pltpu.CompilerParams(
                # batch=2 -> single grid step; with larger batches the parallel
                # grid shards batch tiles across v7x's two TensorCores.
                dimension_semantics=("parallel",)),
            cost_estimate=pl.CostEstimate(
                flops=flops, transcendentals=0, bytes_accessed=bytes_accessed),
        )(x_flat, w1r, b1r, m2, bv2, m3, bv3)

        ho, wo = meta["out_hw"]
        return out[:n, :meta["d3"]].reshape(n, meta["cout"], ho, wo)

    return forward


def init_conv_params(key, cout, cin, k):
    """Deterministic init mimicking PyTorch Conv2d default (uniform +-1/sqrt(fan_in))."""
    wkey, bkey = jax.random.split(key)
    fan_in = cin * k * k
    bound = 1.0 / np.sqrt(fan_in)
    w = jax.random.uniform(wkey, (cout, cin, k, k), jnp.float32, -bound, bound)
    b = jax.random.uniform(bkey, (cout,), jnp.float32, -bound, bound)
    return w, b


def conv_relu_ref(x, w, b, stride, padding):
    y = lax.conv_general_dilated(
        x, w, window_strides=(stride, stride),
        padding=[(padding, padding), (padding, padding)],
        dimension_numbers=("NCHW", "OIHW", "NCHW"))
    return jnp.maximum(y + b.reshape(1, -1, 1, 1), 0.0)


if __name__ == "__main__":
    key = jax.random.PRNGKey(0)
    kx, k1, k2, k3 = jax.random.split(key, 4)

    # small NCHW input consistent with the module's single-channel input
    x = jax.random.normal(kx, (2, 1, 16, 16), jnp.float32)

    w1, b1 = init_conv_params(k1, 3, 1, 1)   # conv1: Conv2d(1, 3, 1, stride=1, padding=1)
    w2, b2 = init_conv_params(k2, 6, 3, 3)   # conv2: Conv2d(3, 6, 3, stride=2, padding=1)
    # TODO(synk): the torch module declares conv3 = Conv2d(3, 6, ...) but feeds it
    # the 6-channel conv2 output (would raise at runtime in PyTorch); we use
    # in_channels=6 so the forward chain is well-defined.
    w3, b3 = init_conv_params(k3, 6, 6, 3)   # conv3: 6 -> 6, k=3, s=2, p=1

    params = ((w1, b1), (w2, b2), (w3, b3))

    folded, meta = fold_model_params(params, x.shape)   # one-time weight fold
    forward = make_model_forward(folded, meta)          # single jitted dispatch

    out = jax.block_until_ready(forward(x))

    # correctness check against a pure-JAX f32 reference of the same chain
    # (tolerances loosened for the bf16 MXU-operand weights)
    v2 = conv_relu_ref(x, w1, b1, 1, 1)
    v4 = conv_relu_ref(v2, w2, b2, 2, 1)
    v6 = conv_relu_ref(v4, w3, b3, 2, 1)
    np.testing.assert_allclose(np.asarray(out), np.asarray(v6), rtol=2e-2, atol=1e-2)
    assert out.shape == (2, 6, 5, 5), out.shape

    print("KERNEL_OK")
</pallas_src>

<mosaic_0001>
module attributes {stable_mosaic.version = 11 : i64} {
  func.func @kernel(%arg0: i32, %arg1: memref<8x256xf32, #tpu.memory_space<vmem>>, %arg2: memref<1x768xf32, #tpu.memory_space<vmem>>, %arg3: memref<1x768xf32, #tpu.memory_space<vmem>>, %arg4: memref<768x512xbf16, #tpu.memory_space<vmem>>, %arg5: memref<1x512xf32, #tpu.memory_space<vmem>>, %arg6: memref<512x256xbf16, #tpu.memory_space<vmem>>, %arg7: memref<1x256xf32, #tpu.memory_space<vmem>>, %arg8: memref<8x256xf32, #tpu.memory_space<vmem>>) attributes {dimension_semantics = [#tpu.dimension_semantics<parallel>], iteration_bounds = array<i64: 1>, scalar_prefetch = 0 : i64, scratch_operands = 0 : i64, tpu.core_type = #tpu.core_type<tc>, window_params = [{transform_indices = @transform_0, window_bounds = array<i64: 8, 256>}, {pipeline_mode = #tpu.pipeline_mode<synchronous>, transform_indices = @transform_1, window_bounds = array<i64: 1, 768>}, {pipeline_mode = #tpu.pipeline_mode<synchronous>, transform_indices = @transform_2, window_bounds = array<i64: 1, 768>}, {pipeline_mode = #tpu.pipeline_mode<synchronous>, transform_indices = @transform_3, window_bounds = array<i64: 768, 512>}, {pipeline_mode = #tpu.pipeline_mode<synchronous>, transform_indices = @transform_4, window_bounds = array<i64: 1, 512>}, {pipeline_mode = #tpu.pipeline_mode<synchronous>, transform_indices = @transform_5, window_bounds = array<i64: 512, 256>}, {pipeline_mode = #tpu.pipeline_mode<synchronous>, transform_indices = @transform_6, window_bounds = array<i64: 1, 256>}, {transform_indices = @transform_7, window_bounds = array<i64: 8, 256>}]} {
    %c0 = arith.constant 0 : index
    %c0_0 = arith.constant 0 : index
    %0 = vector.load %arg1[%c0, %c0_0] : memref<8x256xf32, #tpu.memory_space<vmem>>, vector<8x256xf32>
    %1 = tpu.concatenate %0, %0, %0 in 1 : vector<8x256xf32>, vector<8x256xf32>, vector<8x256xf32> -> vector<8x768xf32>
    %c0_1 = arith.constant 0 : index
    %c0_2 = arith.constant 0 : index
    %2 = vector.load %arg2[%c0_1, %c0_2] : memref<1x768xf32, #tpu.memory_space<vmem>>, vector<1x768xf32>
    %3 = vector.broadcast %2 : vector<1x768xf32> to vector<8x768xf32>
    %4 = arith.mulf %1, %3 : vector<8x768xf32>
    %c0_3 = arith.constant 0 : index
    %c0_4 = arith.constant 0 : index
    %5 = vector.load %arg3[%c0_3, %c0_4] : memref<1x768xf32, #tpu.memory_space<vmem>>, vector<1x768xf32>
    %6 = vector.broadcast %5 : vector<1x768xf32> to vector<8x768xf32>
    %7 = arith.addf %4, %6 : vector<8x768xf32>
    %cst = arith.constant 0.000000e+00 : f32
    %8 = vector.broadcast %cst : f32 to vector<8x768xf32>
    %9 = arith.maximumf %7, %8 : vector<8x768xf32>
    %10 = arith.truncf %9 : vector<8x768xf32> to vector<8x768xbf16>
    %c0_5 = arith.constant 0 : index
    %c0_6 = arith.constant 0 : index
    %11 = vector.load %arg4[%c0_5, %c0_6] : memref<768x512xbf16, #tpu.memory_space<vmem>>, vector<768x512xbf16>
    %cst_7 = arith.constant dense<0.000000e+00> : vector<8x512xf32>
    %12 = tpu.matmul %10, %11, %cst_7 {dimension_numbers = #tpu.dot_dimension_numbers<[1], [0], [0], [1], [0, 0, 1, 1], [], []>} : vector<8x768xbf16>, vector<768x512xbf16>, vector<8x512xf32> -> vector<8x512xf32>
    %c0_8 = arith.constant 0 : index
    %c0_9 = arith.constant 0 : index
    %13 = vector.load %arg5[%c0_8, %c0_9] : memref<1x512xf32, #tpu.memory_space<vmem>>, vector<1x512xf32>
    %14 = vector.broadcast %13 : vector<1x512xf32> to vector<8x512xf32>
    %15 = arith.addf %12, %14 : vector<8x512xf32>
    %cst_10 = arith.constant 0.000000e+00 : f32
    %16 = vector.broadcast %cst_10 : f32 to vector<8x512xf32>
    %17 = arith.maximumf %15, %16 : vector<8x512xf32>
    %18 = arith.truncf %17 : vector<8x512xf32> to vector<8x512xbf16>
    %c0_11 = arith.constant 0 : index
    %c0_12 = arith.constant 0 : index
    %19 = vector.load %arg6[%c0_11, %c0_12] : memref<512x256xbf16, #tpu.memory_space<vmem>>, vector<512x256xbf16>
    %cst_13 = arith.constant dense<0.000000e+00> : vector<8x256xf32>
    %20 = tpu.matmul %18, %19, %cst_13 {dimension_numbers = #tpu.dot_dimension_numbers<[1], [0], [0], [1], [0, 0, 1, 1], [], []>} : vector<8x512xbf16>, vector<512x256xbf16>, vector<8x256xf32> -> vector<8x256xf32>
    %c0_14 = arith.constant 0 : index
    %c0_15 = arith.constant 0 : index
    %21 = vector.load %arg7[%c0_14, %c0_15] : memref<1x256xf32, #tpu.memory_space<vmem>>, vector<1x256xf32>
    %22 = vector.broadcast %21 : vector<1x256xf32> to vector<8x256xf32>
    %23 = arith.addf %20, %22 : vector<8x256xf32>
    %cst_16 = arith.constant 0.000000e+00 : f32
    %24 = vector.broadcast %cst_16 : f32 to vector<8x256xf32>
    %25 = arith.maximumf %23, %24 : vector<8x256xf32>
    %c0_17 = arith.constant 0 : index
    %c0_18 = arith.constant 0 : index
    %26 = vector.load %arg8[%c0_17, %c0_18] : memref<8x256xf32, #tpu.memory_space<vmem>>, vector<8x256xf32>
    tpu.vector_store %arg8[%c0_17, %c0_18], %25 {strides = array<i32>} : memref<8x256xf32, #tpu.memory_space<vmem>>, vector<8x256xf32>,
    return
  }
  func.func @transform_0(%arg0: i32) -> (i32, i32) {
    %c0_i32 = arith.constant 0 : i32
    %c0_i32_0 = arith.constant 0 : i32
    return %arg0, %c0_i32 : i32, i32
  }
  func.func @transform_1(%arg0: i32) -> (i32, i32) {
    %c0_i32 = arith.constant 0 : i32
    %c0_i32_0 = arith.constant 0 : i32
    %c0_i32_1 = arith.constant 0 : i32
    return %c0_i32, %c0_i32_0 : i32, i32
  }
  func.func @transform_2(%arg0: i32) -> (i32, i32) {
    %c0_i32 = arith.constant 0 : i32
    %c0_i32_0 = arith.constant 0 : i32
    %c0_i32_1 = arith.constant 0 : i32
    return %c0_i32, %c0_i32_0 : i32, i32
  }
  func.func @transform_3(%arg0: i32) -> (i32, i32) {
    %c0_i32 = arith.constant 0 : i32
    %c0_i32_0 = arith.constant 0 : i32
    %c0_i32_1 = arith.constant 0 : i32
    return %c0_i32, %c0_i32_0 : i32, i32
  }
  func.func @transform_4(%arg0: i32) -> (i32, i32) {
    %c0_i32 = arith.constant 0 : i32
    %c0_i32_0 = arith.constant 0 : i32
    %c0_i32_1 = arith.constant 0 : i32
    return %c0_i32, %c0_i32_0 : i32, i32
  }
  func.func @transform_5(%arg0: i32) -> (i32, i32) {
    %c0_i32 = arith.constant 0 : i32
    %c0_i32_0 = arith.constant 0 : i32
    %c0_i32_1 = arith.constant 0 : i32
    return %c0_i32, %c0_i32_0 : i32, i32
  }
  func.func @transform_6(%arg0: i32) -> (i32, i32) {
    %c0_i32 = arith.constant 0 : i32
    %c0_i32_0 = arith.constant 0 : i32
    %c0_i32_1 = arith.constant 0 : i32
    return %c0_i32, %c0_i32_0 : i32, i32
  }
  func.func @transform_7(%arg0: i32) -> (i32, i32) {
    %c0_i32 = arith.constant 0 : i32
    %c0_i32_0 = arith.constant 0 : i32
    return %arg0, %c0_i32 : i32, i32
  }
}

</mosaic_0001>

<llo_original>
// kernel: forward.1
$region0: #{forward.1}
  #allocation0 [shape = 'u32[]', space=smem, size = 0x4, offset = 0x4, fixed_abs, tag = 'smem constant byte address 0x4 - core index']
  #allocation1 [shape = 'u32[144,128]{1,0:T(1,128)}', space=vmem, size = 0x12000, scoped, tag = 'internal scratch']
  %s0 = inlined_call_operand.vmem [shape: f32[8,256], index: 0, kind: input, shape index: {}]
  %s1 = inlined_call_operand.vmem [shape: f32[1,768], index: 1, kind: input, shape index: {}]
  %s2 = inlined_call_operand.vmem [shape: f32[1,768], index: 2, kind: input, shape index: {}]
  %s3 = inlined_call_operand.hbm [shape: bf16[768,512], index: 3, kind: input, shape index: {}]
  %s4 = inlined_call_operand.vmem [shape: f32[1,512], index: 4, kind: input, shape index: {}]
  %s5 = inlined_call_operand.hbm [shape: bf16[512,256], index: 5, kind: input, shape index: {}]
  %s6 = inlined_call_operand.vmem [shape: f32[1,256], index: 6, kind: input, shape index: {}]
  %s7 = inlined_call_operand.vmem [shape: f32[8,256], index: 7, kind: output, shape index: {}]
  %s8 = sld [smem:[#allocation0]]
  $region46: #{forward.1} parent=0
    _
  %s10 = ssub.s32 1, %s8
  %s11 = scalar_select 0, %s10, %s8
  $region1: #{forward.1} parent=0
    #allocation2 [shape = 'u8[786432]{0}', space=vmem, size = 0xc0000, scoped, tag = 'input window, operand 3, single buffered']
    #allocation3 [shape = 's32[1]{0}', space=sflag, size = 0x4, scoped, tag = 'scoped memory for forward.1']
    #allocation4 [shape = 'u8[262144]{0}', space=vmem, size = 0x40000, scoped, tag = 'input window, operand 5, single buffered']
    #allocation5 [shape = 's32[1]{0}', space=sflag, size = 0x4, scoped, tag = 'scoped memory for forward.1']
    %12 = vsyncpa [#allocation3], 0
    %13 = vsyncpa [#allocation5], 0
    // Predicated region
    $region2: #{forward.1} parent=1 // pred_check
      _
    $region3: #{forward.1} parent=1 // pred_check_branch
      %15 = sbr.rel (0) target = $region5
    $region4: #{forward.1} parent=1 // pred_region
      _
    $region5: #{forward.1} parent=1 // pred_fallthru
      _
    // Predicated region
    $region6: #{forward.1} parent=1 // pred_check
      _
    $region7: #{forward.1} parent=1 // pred_check_branch
      %17 = sbr.rel (0) target = $region9
    $region8: #{forward.1} parent=1 // pred_region
      _
    $region9: #{forward.1} parent=1 // pred_fallthru
      _
    // Predicated region
    $region10: #{forward.1} parent=1 // pred_check
      _
    $region11: #{forward.1} parent=1 // pred_check_branch
      %19 = sbr.rel (0) target = $region13
    $region12: #{forward.1} parent=1 // pred_region
      _
    $region13: #{forward.1} parent=1 // pred_fallthru
      _
    // Predicated region
    $region14: #{forward.1} parent=1 // pred_check
      _
    $region15: #{forward.1} parent=1 // pred_check_branch
      %21 = sbr.rel (0) target = $region17
    $region16: #{forward.1} parent=1 // pred_region
      %s23 = ssub.s32 24576, 24576
      %24 = vsyncadd [#allocation3], %s23
      %s25 = sshll.u32 [#allocation2], 4
      %s26 = int_to_ptr.vmem [resolvable:$true] %s25
      %31 = dma.hbm_to_vmem [thread:$0]  %s3, 24576, %s26, [#allocation3], 256, 256, 16
    $region17: #{forward.1} parent=1 // pred_fallthru
      _
    // Predicated region
    $region18: #{forward.1} parent=1 // pred_check
      _
    $region19: #{forward.1} parent=1 // pred_check_branch
      %33 = sbr.rel (0) target = $region21
    $region20: #{forward.1} parent=1 // pred_region
      _
    $region21: #{forward.1} parent=1 // pred_fallthru
      _
    // Predicated region
    $region22: #{forward.1} parent=1 // pred_check
      _
    $region23: #{forward.1} parent=1 // pred_check_branch
      %35 = sbr.rel (0) target = $region25
    $region24: #{forward.1} parent=1 // pred_region
      %s37 = ssub.s32 8192, 8192
      %38 = vsyncadd [#allocation5], %s37
      %s39 = sshll.u32 [#allocation4], 4
      %s40 = int_to_ptr.vmem [resolvable:$true] %s39
      %45 = dma.hbm_to_vmem [thread:$0]  %s5, 8192, %s40, [#allocation5], 128, 128, 8
    $region25: #{forward.1} parent=1 // pred_fallthru
      _
    // Predicated region
    $region26: #{forward.1} parent=1 // pred_check
      _
    $region27: #{forward.1} parent=1 // pred_check_branch
      %47 = sbr.rel (0) target = $region29
    $region28: #{forward.1} parent=1 // pred_region
      _
    $region29: #{forward.1} parent=1 // pred_fallthru
      _
    // Predicated region
    $region30: #{forward.1} parent=1 // pred_check
      _
    $region31: #{forward.1} parent=1 // pred_check_branch
      %49 = sbr.rel (0) target = $region33
    $region32: #{forward.1} parent=1 // pred_region
      %50 = dma.done [#allocation3], 24576
    $region33: #{forward.1} parent=1 // pred_fallthru
      _
    // Predicated region
    $region34: #{forward.1} parent=1 // pred_check
      _
    $region35: #{forward.1} parent=1 // pred_check_branch
      %52 = sbr.rel (0) target = $region37
    $region36: #{forward.1} parent=1 // pred_region
      %53 = dma.done [#allocation5], 8192
    $region37: #{forward.1} parent=1 // pred_fallthru
      _
    %v54 = vld [vmem:[%s0] sm:$0xff]
    %v55 = vld [vmem:[%s0 + $0x8] sm:$0xff]
    %v56 = vld [vmem:[%s1] sm:$0x3f]
    %v58 = vlaneseq
    %v59 = vshrl.u32 %v58, 7
    %v60 = vsub.s32 0, %v59
    %v61 = vrot.slane %v56, %v60
    %v62 = vlaneseq
    %v63 = vshrl.u32 %v62, 7
    %v64 = vsub.s32 1, %v63
    %v65 = vrot.slane %v56, %v64
    %v66 = vlaneseq
    %v67 = vshrl.u32 %v66, 7
    %v68 = vsub.s32 2, %v67
    %v69 = vrot.slane %v56, %v68
    %v70 = vlaneseq
    %v71 = vshrl.u32 %v70, 7
    %v72 = vsub.s32 3, %v71
    %v73 = vrot.slane %v56, %v72
    %v74 = vlaneseq
    %v75 = vshrl.u32 %v74, 7
    %v76 = vsub.s32 4, %v75
    %v77 = vrot.slane %v56, %v76
    %v78 = vlaneseq
    %v79 = vshrl.u32 %v78, 7
    %v80 = vsub.s32 5, %v79
    %v81 = vrot.slane %v56, %v80
    %v88 = vmul.f32 %v54, %v61
    %v89 = vmul.f32 %v55, %v65
    %v90 = vmul.f32 %v54, %v69
    %v91 = vmul.f32 %v55, %v73
    %v92 = vmul.f32 %v54, %v77
    %v93 = vmul.f32 %v55, %v81
    %v94 = vld [vmem:[%s2] sm:$0x3f]
    %v96 = vlaneseq
    %v97 = vshrl.u32 %v96, 7
    %v98 = vsub.s32 0, %v97
    %v99 = vrot.slane %v94, %v98
    %v100 = vlaneseq
    %v101 = vshrl.u32 %v100, 7
    %v102 = vsub.s32 1, %v101
    %v103 = vrot.slane %v94, %v102
    %v104 = vlaneseq
    %v105 = vshrl.u32 %v104, 7
    %v106 = vsub.s32 2, %v105
    %v107 = vrot.slane %v94, %v106
    %v108 = vlaneseq
    %v109 = vshrl.u32 %v108, 7
    %v110 = vsub.s32 3, %v109
    %v111 = vrot.slane %v94, %v110
    %v112 = vlaneseq
    %v113 = vshrl.u32 %v112, 7
    %v114 = vsub.s32 4, %v113
    %v115 = vrot.slane %v94, %v114
    %v116 = vlaneseq
    %v117 = vshrl.u32 %v116, 7
    %v118 = vsub.s32 5, %v117
    %v119 = vrot.slane %v94, %v118
    %v126 = vadd.f32 %v88, %v99
    %v127 = vadd.f32 %v89, %v103
    %v128 = vadd.f32 %v90, %v107
    %v129 = vadd.f32 %v91, %v111
    %v130 = vadd.f32 %v92, %v115
    %v131 = vadd.f32 %v93, %v119
    %v132 = vmax.f32 %v126, 0.0
    %v133 = vmax.f32 %v127, 0.0
    %v134 = vmax.f32 %v128, 0.0
    %v135 = vmax.f32 %v129, 0.0
    %v136 = vmax.f32 %v130, 0.0
    %v137 = vmax.f32 %v131, 0.0
    %v138 = vpack.c.bf16 %v132, %v132
    %v139 = vpack.c.bf16 %v133, %v133
    %v140 = vpack.c.bf16 %v134, %v134
    %v141 = vpack.c.bf16 %v135, %v135
    %v142 = vpack.c.bf16 %v136, %v136
    %v143 = vpack.c.bf16 %v137, %v137
    %v144 = vld [vmem:[#allocation2] sm:$0xff]
    %v145 = vld [vmem:[#allocation2 + $0x8] sm:$0xff]
    %v146 = vld [vmem:[#allocation2 + $0x10] sm:$0xff]
    %v147 = vld [vmem:[#allocation2 + $0x18] sm:$0xff]
    %v148 = vld [vmem:[#allocation2 + $0x20] sm:$0xff]
    %v149 = vld [vmem:[#allocation2 + $0x28] sm:$0xff]
    %v150 = vld [vmem:[#allocation2 + $0x30] sm:$0xff]
    %v151 = vld [vmem:[#allocation2 + $0x38] sm:$0xff]
    %v152 = vld [vmem:[#allocation2 + $0x40] sm:$0xff]
    %v153 = vld [vmem:[#allocation2 + $0x48] sm:$0xff]
    %v154 = vld [vmem:[#allocation2 + $0x50] sm:$0xff]
    %v155 = vld [vmem:[#allocation2 + $0x58] sm:$0xff]
    %v156 = vld [vmem:[#allocation2 + $0x60] sm:$0xff]
    %v157 = vld [vmem:[#allocation2 + $0x68] sm:$0xff]
    %v158 = vld [vmem:[#allocation2 + $0x70] sm:$0xff]
    %v159 = vld [vmem:[#allocation2 + $0x78] sm:$0xff]
    %v160 = vld [vmem:[#allocation2 + $0x80] sm:$0xff]
    %v161 = vld [vmem:[#allocation2 + $0x88] sm:$0xff]
    %v162 = vld [vmem:[#allocation2 + $0x90] sm:$0xff]
    %v163 = vld [vmem:[#allocation2 + $0x98] sm:$0xff]
    %v164 = vld [vmem:[#allocation2 + $0xa0] sm:$0xff]
    %v165 = vld [vmem:[#allocation2 + $0xa8] sm:$0xff]
    %v166 = vld [vmem:[#allocation2 + $0xb0] sm:$0xff]
    %v167 = vld [vmem:[#allocation2 + $0xb8] sm:$0xff]
    %v168 = vld [vmem:[#allocation2 + $0xc0] sm:$0xff]
    %v169 = vld [vmem:[#allocation2 + $0xc8] sm:$0xff]
    %v170 = vld [vmem:[#allocation2 + $0xd0] sm:$0xff]
    %v171 = vld [vmem:[#allocation2 + $0xd8] sm:$0xff]
    %v172 = vld [vmem:[#allocation2 + $0xe0] sm:$0xff]
    %v173 = vld [vmem:[#allocation2 + $0xe8] sm:$0xff]
    %v174 = vld [vmem:[#allocation2 + $0xf0] sm:$0xff]
    %v175 = vld [vmem:[#allocation2 + $0xf8] sm:$0xff]
    %v176 = vld [vmem:[#allocation2 + $0x100] sm:$0xff]
    %v177 = vld [vmem:[#allocation2 + $0x108] sm:$0xff]
    %v178 = vld [vmem:[#allocation2 + $0x110] sm:$0xff]
    %v179 = vld [vmem:[#allocation2 + $0x118] sm:$0xff]
    %v180 = vld [vmem:[#allocation2 + $0x120] sm:$0xff]
    %v181 = vld [vmem:[#allocation2 + $0x128] sm:$0xff]
    %v182 = vld [vmem:[#allocation2 + $0x130] sm:$0xff]
    %v183 = vld [vmem:[#allocation2 + $0x138] sm:$0xff]
    %v184 = vld [vmem:[#allocation2 + $0x140] sm:$0xff]
    %v185 = vld [vmem:[#allocation2 + $0x148] sm:$0xff]
    %v186 = vld [vmem:[#allocation2 + $0x150] sm:$0xff]
    %v187 = vld [vmem:[#allocation2 + $0x158] sm:$0xff]
    %v188 = vld [vmem:[#allocation2 + $0x160] sm:$0xff]
    %v189 = vld [vmem:[#allocation2 + $0x168] sm:$0xff]
    %v190 = vld [vmem:[#allocation2 + $0x170] sm:$0xff]
    %v191 = vld [vmem:[#allocation2 + $0x178] sm:$0xff]
    %v192 = vld [vmem:[#allocation2 + $0x180] sm:$0xff]
    %v193 = vld [vmem:[#allocation2 + $0x188] sm:$0xff]
    %v194 = vld [vmem:[#allocation2 + $0x190] sm:$0xff]
    %v195 = vld [vmem:[#allocation2 + $0x198] sm:$0xff]
    %v196 = vld [vmem:[#allocation2 + $0x1a0] sm:$0xff]
    %v197 = vld [vmem:[#allocation2 + $0x1a8] sm:$0xff]
    %v198 = vld [vmem:[#allocation2 + $0x1b0] sm:$0xff]
    %v199 = vld [vmem:[#allocation2 + $0x1b8] sm:$0xff]
    %v200 = vld [vmem:[#allocation2 + $0x1c0] sm:$0xff]
    %v201 = vld [vmem:[#allocation2 + $0x1c8] sm:$0xff]
    %v202 = vld [vmem:[#allocation2 + $0x1d0] sm:$0xff]
    %v203 = vld [vmem:[#allocation2 + $0x1d8] sm:$0xff]
    %v204 = vld [vmem:[#allocation2 + $0x1e0] sm:$0xff]
    %v205 = vld [vmem:[#allocation2 + $0x1e8] sm:$0xff]
    %v206 = vld [vmem:[#allocation2 + $0x1f0] sm:$0xff]
    %v207 = vld [vmem:[#allocation2 + $0x1f8] sm:$0xff]
    %v208 = vld [vmem:[#allocation2 + $0x200] sm:$0xff]
    %v209 = vld [vmem:[#allocation2 + $0x208] sm:$0xff]
    %v210 = vld [vmem:[#allocation2 + $0x210] sm:$0xff]
    %v211 = vld [vmem:[#allocation2 + $0x218] sm:$0xff]
    %v212 = vld [vmem:[#allocation2 + $0x220] sm:$0xff]
    %v213 = vld [vmem:[#allocation2 + $0x228] sm:$0xff]
    %v214 = vld [vmem:[#allocation2 + $0x230] sm:$0xff]
    %v215 = vld [vmem:[#allocation2 + $0x238] sm:$0xff]
    %v216 = vld [vmem:[#allocation2 + $0x240] sm:$0xff]
    %v217 = vld [vmem:[#allocation2 + $0x248] sm:$0xff]
    %v218 = vld [vmem:[#allocation2 + $0x250] sm:$0xff]
    %v219 = vld [vmem:[#allocation2 + $0x258] sm:$0xff]
    %v220 = vld [vmem:[#allocation2 + $0x260] sm:$0xff]
    %v221 = vld [vmem:[#allocation2 + $0x268] sm:$0xff]
    %v222 = vld [vmem:[#allocation2 + $0x270] sm:$0xff]
    %v223 = vld [vmem:[#allocation2 + $0x278] sm:$0xff]
    %v224 = vld [vmem:[#allocation2 + $0x280] sm:$0xff]
    %v225 = vld [vmem:[#allocation2 + $0x288] sm:$0xff]
    %v226 = vld [vmem:[#allocation2 + $0x290] sm:$0xff]
    %v227 = vld [vmem:[#allocation2 + $0x298] sm:$0xff]
    %v228 = vld [vmem:[#allocation2 + $0x2a0] sm:$0xff]
    %v229 = vld [vmem:[#allocation2 + $0x2a8] sm:$0xff]
    %v230 = vld [vmem:[#allocation2 + $0x2b0] sm:$0xff]
    %v231 = vld [vmem:[#allocation2 + $0x2b8] sm:$0xff]
    %v232 = vld [vmem:[#allocation2 + $0x2c0] sm:$0xff]
    %v233 = vld [vmem:[#allocation2 + $0x2c8] sm:$0xff]
    %v234 = vld [vmem:[#allocation2 + $0x2d0] sm:$0xff]
    %v235 = vld [vmem:[#allocation2 + $0x2d8] sm:$0xff]
    %v236 = vld [vmem:[#allocation2 + $0x2e0] sm:$0xff]
    %v237 = vld [vmem:[#allocation2 + $0x2e8] sm:$0xff]
    %v238 = vld [vmem:[#allocation2 + $0x2f0] sm:$0xff]
    %v239 = vld [vmem:[#allocation2 + $0x2f8] sm:$0xff]
    %v240 = vld [vmem:[#allocation2 + $0x300] sm:$0xff]
    %v241 = vld [vmem:[#allocation2 + $0x308] sm:$0xff]
    %v242 = vld [vmem:[#allocation2 + $0x310] sm:$0xff]
    %v243 = vld [vmem:[#allocation2 + $0x318] sm:$0xff]
    %v244 = vld [vmem:[#allocation2 + $0x320] sm:$0xff]
    %v245 = vld [vmem:[#allocation2 + $0x328] sm:$0xff]
    %v246 = vld [vmem:[#allocation2 + $0x330] sm:$0xff]
    %v247 = vld [vmem:[#allocation2 + $0x338] sm:$0xff]
    %v248 = vld [vmem:[#allocation2 + $0x340] sm:$0xff]
    %v249 = vld [vmem:[#allocation2 + $0x348] sm:$0xff]
    %v250 = vld [vmem:[#allocation2 + $0x350] sm:$0xff]
    %v251 = vld [vmem:[#allocation2 + $0x358] sm:$0xff]
    %v252 = vld [vmem:[#allocation2 + $0x360] sm:$0xff]
    %v253 = vld [vmem:[#allocation2 + $0x368] sm:$0xff]
    %v254 = vld [vmem:[#allocation2 + $0x370] sm:$0xff]
    %v255 = vld [vmem:[#allocation2 + $0x378] sm:$0xff]
    %v256 = vld [vmem:[#allocation2 + $0x380] sm:$0xff]
    %v257 = vld [vmem:[#allocation2 + $0x388] sm:$0xff]
    %v258 = vld [vmem:[#allocation2 + $0x390] sm:$0xff]
    %v259 = vld [vmem:[#allocation2 + $0x398] sm:$0xff]
    %v260 = vld [vmem:[#allocation2 + $0x3a0] sm:$0xff]
    %v261 = vld [vmem:[#allocation2 + $0x3a8] sm:$0xff]
    %v262 = vld [vmem:[#allocation2 + $0x3b0] sm:$0xff]
    %v263 = vld [vmem:[#allocation2 + $0x3b8] sm:$0xff]
    %v264 = vld [vmem:[#allocation2 + $0x3c0] sm:$0xff]
    %v265 = vld [vmem:[#allocation2 + $0x3c8] sm:$0xff]
    %v266 = vld [vmem:[#allocation2 + $0x3d0] sm:$0xff]
    %v267 = vld [vmem:[#allocation2 + $0x3d8] sm:$0xff]
    %v268 = vld [vmem:[#allocation2 + $0x3e0] sm:$0xff]
    %v269 = vld [vmem:[#allocation2 + $0x3e8] sm:$0xff]
    %v270 = vld [vmem:[#allocation2 + $0x3f0] sm:$0xff]
    %v271 = vld [vmem:[#allocation2 + $0x3f8] sm:$0xff]
    %v272 = vld [vmem:[#allocation2 + $0x400] sm:$0xff]
    %v273 = vld [vmem:[#allocation2 + $0x408] sm:$0xff]
    %v274 = vld [vmem:[#allocation2 + $0x410] sm:$0xff]
    %v275 = vld [vmem:[#allocation2 + $0x418] sm:$0xff]
    %v276 = vld [vmem:[#allocation2 + $0x420] sm:$0xff]
    %v277 = vld [vmem:[#allocation2 + $0x428] sm:$0xff]
    %v278 = vld [vmem:[#allocation2 + $0x430] sm:$0xff]
    %v279 = vld [vmem:[#allocation2 + $0x438] sm:$0xff]
    %v280 = vld [vmem:[#allocation2 + $0x440] sm:$0xff]
    %v281 = vld [vmem:[#allocation2 + $0x448] sm:$0xff]
    %v282 = vld [vmem:[#allocation2 + $0x450] sm:$0xff]
    %v283 = vld [vmem:[#allocation2 + $0x458] sm:$0xff]
    %v284 = vld [vmem:[#allocation2 + $0x460] sm:$0xff]
    %v285 = vld [vmem:[#allocation2 + $0x468] sm:$0xff]
    %v286 = vld [vmem:[#allocation2 + $0x470] sm:$0xff]
    %v287 = vld [vmem:[#allocation2 + $0x478] sm:$0xff]
    %v288 = vld [vmem:[#allocation2 + $0x480] sm:$0xff]
    %v289 = vld [vmem:[#allocation2 + $0x488] sm:$0xff]
    %v290 = vld [vmem:[#allocation2 + $0x490] sm:$0xff]
    %v291 = vld [vmem:[#allocation2 + $0x498] sm:$0xff]
    %v292 = vld [vmem:[#allocation2 + $0x4a0] sm:$0xff]
    %v293 = vld [vmem:[#allocation2 + $0x4a8] sm:$0xff]
    %v294 = vld [vmem:[#allocation2 + $0x4b0] sm:$0xff]
    %v295 = vld [vmem:[#allocation2 + $0x4b8] sm:$0xff]
    %v296 = vld [vmem:[#allocation2 + $0x4c0] sm:$0xff]
    %v297 = vld [vmem:[#allocation2 + $0x4c8] sm:$0xff]
    %v298 = vld [vmem:[#allocation2 + $0x4d0] sm:$0xff]
    %v299 = vld [vmem:[#allocation2 + $0x4d8] sm:$0xff]
    %v300 = vld [vmem:[#allocation2 + $0x4e0] sm:$0xff]
    %v301 = vld [vmem:[#allocation2 + $0x4e8] sm:$0xff]
    %v302 = vld [vmem:[#allocation2 + $0x4f0] sm:$0xff]
    %v303 = vld [vmem:[#allocation2 + $0x4f8] sm:$0xff]
    %v304 = vld [vmem:[#allocation2 + $0x500] sm:$0xff]
    %v305 = vld [vmem:[#allocation2 + $0x508] sm:$0xff]
    %v306 = vld [vmem:[#allocation2 + $0x510] sm:$0xff]
    %v307 = vld [vmem:[#allocation2 + $0x518] sm:$0xff]
    %v308 = vld [vmem:[#allocation2 + $0x520] sm:$0xff]
    %v309 = vld [vmem:[#allocation2 + $0x528] sm:$0xff]
    %v310 = vld [vmem:[#allocation2 + $0x530] sm:$0xff]
    %v311 = vld [vmem:[#allocation2 + $0x538] sm:$0xff]
    %v312 = vld [vmem:[#allocation2 + $0x540] sm:$0xff]
    %v313 = vld [vmem:[#allocation2 + $0x548] sm:$0xff]
    %v314 = vld [vmem:[#allocation2 + $0x550] sm:$0xff]
    %v315 = vld [vmem:[#allocation2 + $0x558] sm:$0xff]
    %v316 = vld [vmem:[#allocation2 + $0x560] sm:$0xff]
    %v317 = vld [vmem:[#allocation2 + $0x568] sm:$0xff]
    %v318 = vld [vmem:[#allocation2 + $0x570] sm:$0xff]
    %v319 = vld [vmem:[#allocation2 + $0x578] sm:$0xff]
    %v320 = vld [vmem:[#allocation2 + $0x580] sm:$0xff]
    %v321 = vld [vmem:[#allocation2 + $0x588] sm:$0xff]
    %v322 = vld [vmem:[#allocation2 + $0x590] sm:$0xff]
    %v323 = vld [vmem:[#allocation2 + $0x598] sm:$0xff]
    %v324 = vld [vmem:[#allocation2 + $0x5a0] sm:$0xff]
    %v325 = vld [vmem:[#allocation2 + $0x5a8] sm:$0xff]
    %v326 = vld [vmem:[#allocation2 + $0x5b0] sm:$0xff]
    %v327 = vld [vmem:[#allocation2 + $0x5b8] sm:$0xff]
    %v328 = vld [vmem:[#allocation2 + $0x5c0] sm:$0xff]
    %v329 = vld [vmem:[#allocation2 + $0x5c8] sm:$0xff]
    %v330 = vld [vmem:[#allocation2 + $0x5d0] sm:$0xff]
    %v331 = vld [vmem:[#allocation2 + $0x5d8] sm:$0xff]
    %v332 = vld [vmem:[#allocation2 + $0x5e0] sm:$0xff]
    %v333 = vld [vmem:[#allocation2 + $0x5e8] sm:$0xff]
    %v334 = vld [vmem:[#allocation2 + $0x5f0] sm:$0xff]
    %v335 = vld [vmem:[#allocation2 + $0x5f8] sm:$0xff]
    %v336 = vld [vmem:[%s4] sm:$0xf]
    %v338 = vlaneseq
    %v339 = vshrl.u32 %v338, 7
    %v340 = vsub.s32 0, %v339
    %v341 = vrot.slane %v336, %v340
    %v342 = vlaneseq
    %v343 = vshrl.u32 %v342, 7
    %v344 = vsub.s32 1, %v343
    %v345 = vrot.slane %v336, %v344
    %v346 = vlaneseq
    %v347 = vshrl.u32 %v346, 7
    %v348 = vsub.s32 2, %v347
    %v349 = vrot.slane %v336, %v348
    %v350 = vlaneseq
    %v351 = vshrl.u32 %v350, 7
    %v352 = vsub.s32 3, %v351
    %v353 = vrot.slane %v336, %v352
    %v550 = vunpack.c.l.b16 %v144
    %v551 = vunpack.c.h.b16 %v144
    %v552 = vunpack.c.l.b16 %v145
    %v553 = vunpack.c.h.b16 %v145
    %v554 = vunpack.c.l.b16 %v146
    %v555 = vunpack.c.h.b16 %v146
    %v556 = vunpack.c.l.b16 %v147
    %v557 = vunpack.c.h.b16 %v147
    %v558 = vunpack.c.l.b16 %v148
    %v559 = vunpack.c.h.b16 %v148
    %v560 = vunpack.c.l.b16 %v149
    %v561 = vunpack.c.h.b16 %v149
    %v562 = vunpack.c.l.b16 %v150
    %v563 = vunpack.c.h.b16 %v150
    %v564 = vunpack.c.l.b16 %v151
    %v565 = vunpack.c.h.b16 %v151
    %v566 = vunpack.c.l.b16 %v152
    %v567 = vunpack.c.h.b16 %v152
    %v568 = vunpack.c.l.b16 %v153
    %v569 = vunpack.c.h.b16 %v153
    %v570 = vunpack.c.l.b16 %v154
    %v571 = vunpack.c.h.b16 %v154
    %v572 = vunpack.c.l.b16 %v155
    %v573 = vunpack.c.h.b16 %v155
    %v574 = vunpack.c.l.b16 %v156
    %v575 = vunpack.c.h.b16 %v156
    %v576 = vunpack.c.l.b16 %v157
    %v577 = vunpack.c.h.b16 %v157
    %v578 = vunpack.c.l.b16 %v158
    %v579 = vunpack.c.h.b16 %v158
    %v580 = vunpack.c.l.b16 %v159
    %v581 = vunpack.c.h.b16 %v159
    %v582 = vunpack.c.l.b16 %v160
    %v583 = vunpack.c.h.b16 %v160
    %v584 = vunpack.c.l.b16 %v161
    %v585 = vunpack.c.h.b16 %v161
    %v586 = vunpack.c.l.b16 %v162
    %v587 = vunpack.c.h.b16 %v162
    %v588 = vunpack.c.l.b16 %v163
    %v589 = vunpack.c.h.b16 %v163
    %v590 = vunpack.c.l.b16 %v164
    %v591 = vunpack.c.h.b16 %v164
    %v592 = vunpack.c.l.b16 %v165
    %v593 = vunpack.c.h.b16 %v165
    %v594 = vunpack.c.l.b16 %v166
    %v595 = vunpack.c.h.b16 %v166
    %v596 = vunpack.c.l.b16 %v167
    %v597 = vunpack.c.h.b16 %v167
    %v598 = vunpack.c.l.b16 %v168
    %v599 = vunpack.c.h.b16 %v168
    %v600 = vunpack.c.l.b16 %v169
    %v601 = vunpack.c.h.b16 %v169
    %v602 = vunpack.c.l.b16 %v170
    %v603 = vunpack.c.h.b16 %v170
    %v604 = vunpack.c.l.b16 %v171
    %v605 = vunpack.c.h.b16 %v171
    %v606 = vunpack.c.l.b16 %v172
    %v607 = vunpack.c.h.b16 %v172
    %v608 = vunpack.c.l.b16 %v173
    %v609 = vunpack.c.h.b16 %v173
    %v610 = vunpack.c.l.b16 %v174
    %v611 = vunpack.c.h.b16 %v174
    %v612 = vunpack.c.l.b16 %v175
    %v613 = vunpack.c.h.b16 %v175
    %v614 = vunpack.c.l.b16 %v176
    %v615 = vunpack.c.h.b16 %v176
    %v616 = vunpack.c.l.b16 %v177
    %v617 = vunpack.c.h.b16 %v177
    %v618 = vunpack.c.l.b16 %v178
    %v619 = vunpack.c.h.b16 %v178
    %v620 = vunpack.c.l.b16 %v179
    %v621 = vunpack.c.h.b16 %v179
    %v622 = vunpack.c.l.b16 %v180
    %v623 = vunpack.c.h.b16 %v180
    %v624 = vunpack.c.l.b16 %v181
    %v625 = vunpack.c.h.b16 %v181
    %v626 = vunpack.c.l.b16 %v182
    %v627 = vunpack.c.h.b16 %v182
    %v628 = vunpack.c.l.b16 %v183
    %v629 = vunpack.c.h.b16 %v183
    %v630 = vunpack.c.l.b16 %v184
    %v631 = vunpack.c.h.b16 %v184
    %v632 = vunpack.c.l.b16 %v185
    %v633 = vunpack.c.h.b16 %v185
    %v634 = vunpack.c.l.b16 %v186
    %v635 = vunpack.c.h.b16 %v186
    %v636 = vunpack.c.l.b16 %v187
    %v637 = vunpack.c.h.b16 %v187
    %v638 = vunpack.c.l.b16 %v188
    %v639 = vunpack.c.h.b16 %v188
    %v640 = vunpack.c.l.b16 %v189
    %v641 = vunpack.c.h.b16 %v189
    %v642 = vunpack.c.l.b16 %v190
    %v643 = vunpack.c.h.b16 %v190
    %v644 = vunpack.c.l.b16 %v191
    %v645 = vunpack.c.h.b16 %v191
    %v646 = vunpack.c.l.b16 %v192
    %v647 = vunpack.c.h.b16 %v192
    %v648 = vunpack.c.l.b16 %v193
    %v649 = vunpack.c.h.b16 %v193
    %v650 = vunpack.c.l.b16 %v194
    %v651 = vunpack.c.h.b16 %v194
    %v652 = vunpack.c.l.b16 %v195
    %v653 = vunpack.c.h.b16 %v195
    %v654 = vunpack.c.l.b16 %v196
    %v655 = vunpack.c.h.b16 %v196
    %v656 = vunpack.c.l.b16 %v197
    %v657 = vunpack.c.h.b16 %v197
    %v658 = vunpack.c.l.b16 %v198
    %v659 = vunpack.c.h.b16 %v198
    %v660 = vunpack.c.l.b16 %v199
    %v661 = vunpack.c.h.b16 %v199
    %v662 = vunpack.c.l.b16 %v200
    %v663 = vunpack.c.h.b16 %v200
    %v664 = vunpack.c.l.b16 %v201
    %v665 = vunpack.c.h.b16 %v201
    %v666 = vunpack.c.l.b16 %v202
    %v667 = vunpack.c.h.b16 %v202
    %v668 = vunpack.c.l.b16 %v203
    %v669 = vunpack.c.h.b16 %v203
    %v670 = vunpack.c.l.b16 %v204
    %v671 = vunpack.c.h.b16 %v204
    %v672 = vunpack.c.l.b16 %v205
    %v673 = vunpack.c.h.b16 %v205
    %v674 = vunpack.c.l.b16 %v206
    %v675 = vunpack.c.h.b16 %v206
    %v676 = vunpack.c.l.b16 %v207
    %v677 = vunpack.c.h.b16 %v207
    %v678 = vunpack.c.l.b16 %v208
    %v679 = vunpack.c.h.b16 %v208
    %v680 = vunpack.c.l.b16 %v209
    %v681 = vunpack.c.h.b16 %v209
    %v682 = vunpack.c.l.b16 %v210
    %v683 = vunpack.c.h.b16 %v210
    %v684 = vunpack.c.l.b16 %v211
    %v685 = vunpack.c.h.b16 %v211
    %v686 = vunpack.c.l.b16 %v212
    %v687 = vunpack.c.h.b16 %v212
    %v688 = vunpack.c.l.b16 %v213
    %v689 = vunpack.c.h.b16 %v213
    %v690 = vunpack.c.l.b16 %v214
    %v691 = vunpack.c.h.b16 %v214
    %v692 = vunpack.c.l.b16 %v215
    %v693 = vunpack.c.h.b16 %v215
    %v694 = vunpack.c.l.b16 %v216
    %v695 = vunpack.c.h.b16 %v216
    %v696 = vunpack.c.l.b16 %v217
    %v697 = vunpack.c.h.b16 %v217
    %v698 = vunpack.c.l.b16 %v218
    %v699 = vunpack.c.h.b16 %v218
    %v700 = vunpack.c.l.b16 %v219
    %v701 = vunpack.c.h.b16 %v219
    %v702 = vunpack.c.l.b16 %v220
    %v703 = vunpack.c.h.b16 %v220
    %v704 = vunpack.c.l.b16 %v221
    %v705 = vunpack.c.h.b16 %v221
    %v706 = vunpack.c.l.b16 %v222
    %v707 = vunpack.c.h.b16 %v222
    %v708 = vunpack.c.l.b16 %v223
    %v709 = vunpack.c.h.b16 %v223
    %v710 = vunpack.c.l.b16 %v224
    %v711 = vunpack.c.h.b16 %v224
    %v712 = vunpack.c.l.b16 %v225
    %v713 = vunpack.c.h.b16 %v225
    %v714 = vunpack.c.l.b16 %v226
    %v715 = vunpack.c.h.b16 %v226
    %v716 = vunpack.c.l.b16 %v227
    %v717 = vunpack.c.h.b16 %v227
    %v718 = vunpack.c.l.b16 %v228
    %v719 = vunpack.c.h.b16 %v228
    %v720 = vunpack.c.l.b16 %v229
    %v721 = vunpack.c.h.b16 %v229
    %v722 = vunpack.c.l.b16 %v230
    %v723 = vunpack.c.h.b16 %v230
    %v724 = vunpack.c.l.b16 %v231
    %v725 = vunpack.c.h.b16 %v231
    %v726 = vunpack.c.l.b16 %v232
    %v727 = vunpack.c.h.b16 %v232
    %v728 = vunpack.c.l.b16 %v233
    %v729 = vunpack.c.h.b16 %v233
    %v730 = vunpack.c.l.b16 %v234
    %v731 = vunpack.c.h.b16 %v234
    %v732 = vunpack.c.l.b16 %v235
    %v733 = vunpack.c.h.b16 %v235
    %v734 = vunpack.c.l.b16 %v236
    %v735 = vunpack.c.h.b16 %v236
    %v736 = vunpack.c.l.b16 %v237
    %v737 = vunpack.c.h.b16 %v237
    %v738 = vunpack.c.l.b16 %v238
    %v739 = vunpack.c.h.b16 %v238
    %v740 = vunpack.c.l.b16 %v239
    %v741 = vunpack.c.h.b16 %v239
    %v742 = vunpack.c.l.b16 %v240
    %v743 = vunpack.c.h.b16 %v240
    %v744 = vunpack.c.l.b16 %v241
    %v745 = vunpack.c.h.b16 %v241
    %v746 = vunpack.c.l.b16 %v242
    %v747 = vunpack.c.h.b16 %v242
    %v748 = vunpack.c.l.b16 %v243
    %v749 = vunpack.c.h.b16 %v243
    %v750 = vunpack.c.l.b16 %v244
    %v751 = vunpack.c.h.b16 %v244
    %v752 = vunpack.c.l.b16 %v245
    %v753 = vunpack.c.h.b16 %v245
    %v754 = vunpack.c.l.b16 %v246
    %v755 = vunpack.c.h.b16 %v246
    %v756 = vunpack.c.l.b16 %v247
    %v757 = vunpack.c.h.b16 %v247
    %v758 = vunpack.c.l.b16 %v248
    %v759 = vunpack.c.h.b16 %v248
    %v760 = vunpack.c.l.b16 %v249
    %v761 = vunpack.c.h.b16 %v249
    %v762 = vunpack.c.l.b16 %v250
    %v763 = vunpack.c.h.b16 %v250
    %v764 = vunpack.c.l.b16 %v251
    %v765 = vunpack.c.h.b16 %v251
    %v766 = vunpack.c.l.b16 %v252
    %v767 = vunpack.c.h.b16 %v252
    %v768 = vunpack.c.l.b16 %v253
    %v769 = vunpack.c.h.b16 %v253
    %v770 = vunpack.c.l.b16 %v254
    %v771 = vunpack.c.h.b16 %v254
    %v772 = vunpack.c.l.b16 %v255
    %v773 = vunpack.c.h.b16 %v255
    %v774 = vunpack.c.l.b16 %v256
    %v775 = vunpack.c.h.b16 %v256
    %v776 = vunpack.c.l.b16 %v257
    %v777 = vunpack.c.h.b16 %v257
    %v778 = vunpack.c.l.b16 %v258
    %v779 = vunpack.c.h.b16 %v258
    %v780 = vunpack.c.l.b16 %v259
    %v781 = vunpack.c.h.b16 %v259
    %v782 = vunpack.c.l.b16 %v260
    %v783 = vunpack.c.h.b16 %v260
    %v784 = vunpack.c.l.b16 %v261
    %v785 = vunpack.c.h.b16 %v261
    %v786 = vunpack.c.l.b16 %v262
    %v787 = vunpack.c.h.b16 %v262
    %v788 = vunpack.c.l.b16 %v263
    %v789 = vunpack.c.h.b16 %v263
    %v790 = vunpack.c.l.b16 %v264
    %v791 = vunpack.c.h.b16 %v264
    %v792 = vunpack.c.l.b16 %v265
    %v793 = vunpack.c.h.b16 %v265
    %v794 = vunpack.c.l.b16 %v266
    %v795 = vunpack.c.h.b16 %v266
    %v796 = vunpack.c.l.b16 %v267
    %v797 = vunpack.c.h.b16 %v267
    %v798 = vunpack.c.l.b16 %v268
    %v799 = vunpack.c.h.b16 %v268
    %v800 = vunpack.c.l.b16 %v269
    %v801 = vunpack.c.h.b16 %v269
    %v802 = vunpack.c.l.b16 %v270
    %v803 = vunpack.c.h.b16 %v270
    %v804 = vunpack.c.l.b16 %v271
    %v805 = vunpack.c.h.b16 %v271
    %v806 = vunpack.c.l.b16 %v272
    %v807 = vunpack.c.h.b16 %v272
    %v808 = vunpack.c.l.b16 %v273
    %v809 = vunpack.c.h.b16 %v273
    %v810 = vunpack.c.l.b16 %v274
    %v811 = vunpack.c.h.b16 %v274
    %v812 = vunpack.c.l.b16 %v275
    %v813 = vunpack.c.h.b16 %v275
    %v814 = vunpack.c.l.b16 %v276
    %v815 = vunpack.c.h.b16 %v276
    %v816 = vunpack.c.l.b16 %v277
    %v817 = vunpack.c.h.b16 %v277
    %v818 = vunpack.c.l.b16 %v278
    %v819 = vunpack.c.h.b16 %v278
    %v820 = vunpack.c.l.b16 %v279
    %v821 = vunpack.c.h.b16 %v279
    %v822 = vunpack.c.l.b16 %v280
    %v823 = vunpack.c.h.b16 %v280
    %v824 = vunpack.c.l.b16 %v281
    %v825 = vunpack.c.h.b16 %v281
    %v826 = vunpack.c.l.b16 %v282
    %v827 = vunpack.c.h.b16 %v282
    %v828 = vunpack.c.l.b16 %v283
    %v829 = vunpack.c.h.b16 %v283
    %v830 = vunpack.c.l.b16 %v284
    %v831 = vunpack.c.h.b16 %v284
    %v832 = vunpack.c.l.b16 %v285
    %v833 = vunpack.c.h.b16 %v285
    %v834 = vunpack.c.l.b16 %v286
    %v835 = vunpack.c.h.b16 %v286
    %v836 = vunpack.c.l.b16 %v287
    %v837 = vunpack.c.h.b16 %v287
    %v838 = vunpack.c.l.b16 %v288
    %v839 = vunpack.c.h.b16 %v288
    %v840 = vunpack.c.l.b16 %v289
    %v841 = vunpack.c.h.b16 %v289
    %v842 = vunpack.c.l.b16 %v290
    %v843 = vunpack.c.h.b16 %v290
    %v844 = vunpack.c.l.b16 %v291
    %v845 = vunpack.c.h.b16 %v291
    %v846 = vunpack.c.l.b16 %v292
    %v847 = vunpack.c.h.b16 %v292
    %v848 = vunpack.c.l.b16 %v293
    %v849 = vunpack.c.h.b16 %v293
    %v850 = vunpack.c.l.b16 %v294
    %v851 = vunpack.c.h.b16 %v294
    %v852 = vunpack.c.l.b16 %v295
    %v853 = vunpack.c.h.b16 %v295
    %v854 = vunpack.c.l.b16 %v296
    %v855 = vunpack.c.h.b16 %v296
    %v856 = vunpack.c.l.b16 %v297
    %v857 = vunpack.c.h.b16 %v297
    %v858 = vunpack.c.l.b16 %v298
    %v859 = vunpack.c.h.b16 %v298
    %v860 = vunpack.c.l.b16 %v299
    %v861 = vunpack.c.h.b16 %v299
    %v862 = vunpack.c.l.b16 %v300
    %v863 = vunpack.c.h.b16 %v300
    %v864 = vunpack.c.l.b16 %v301
    %v865 = vunpack.c.h.b16 %v301
    %v866 = vunpack.c.l.b16 %v302
    %v867 = vunpack.c.h.b16 %v302
    %v868 = vunpack.c.l.b16 %v303
    %v869 = vunpack.c.h.b16 %v303
    %v870 = vunpack.c.l.b16 %v304
    %v871 = vunpack.c.h.b16 %v304
    %v872 = vunpack.c.l.b16 %v305
    %v873 = vunpack.c.h.b16 %v305
    %v874 = vunpack.c.l.b16 %v306
    %v875 = vunpack.c.h.b16 %v306
    %v876 = vunpack.c.l.b16 %v307
    %v877 = vunpack.c.h.b16 %v307
    %v878 = vunpack.c.l.b16 %v308
    %v879 = vunpack.c.h.b16 %v308
    %v880 = vunpack.c.l.b16 %v309
    %v881 = vunpack.c.h.b16 %v309
    %v882 = vunpack.c.l.b16 %v310
    %v883 = vunpack.c.h.b16 %v310
    %v884 = vunpack.c.l.b16 %v311
    %v885 = vunpack.c.h.b16 %v311
    %v886 = vunpack.c.l.b16 %v312
    %v887 = vunpack.c.h.b16 %v312
    %v888 = vunpack.c.l.b16 %v313
    %v889 = vunpack.c.h.b16 %v313
    %v890 = vunpack.c.l.b16 %v314
    %v891 = vunpack.c.h.b16 %v314
    %v892 = vunpack.c.l.b16 %v315
    %v893 = vunpack.c.h.b16 %v315
    %v894 = vunpack.c.l.b16 %v316
    %v895 = vunpack.c.h.b16 %v316
    %v896 = vunpack.c.l.b16 %v317
    %v897 = vunpack.c.h.b16 %v317
    %v898 = vunpack.c.l.b16 %v318
    %v899 = vunpack.c.h.b16 %v318
    %v900 = vunpack.c.l.b16 %v319
    %v901 = vunpack.c.h.b16 %v319
    %v902 = vunpack.c.l.b16 %v320
    %v903 = vunpack.c.h.b16 %v320
    %v904 = vunpack.c.l.b16 %v321
    %v905 = vunpack.c.h.b16 %v321
    %v906 = vunpack.c.l.b16 %v322
    %v907 = vunpack.c.h.b16 %v322
    %v908 = vunpack.c.l.b16 %v323
    %v909 = vunpack.c.h.b16 %v323
    %v910 = vunpack.c.l.b16 %v324
    %v911 = vunpack.c.h.b16 %v324
    %v912 = vunpack.c.l.b16 %v325
    %v913 = vunpack.c.h.b16 %v325
    %v914 = vunpack.c.l.b16 %v326
    %v915 = vunpack.c.h.b16 %v326
    %v916 = vunpack.c.l.b16 %v327
    %v917 = vunpack.c.h.b16 %v327
    %v918 = vunpack.c.l.b16 %v328
    %v919 = vunpack.c.h.b16 %v328
    %v920 = vunpack.c.l.b16 %v329
    %v921 = vunpack.c.h.b16 %v329
    %v922 = vunpack.c.l.b16 %v330
    %v923 = vunpack.c.h.b16 %v330
    %v924 = vunpack.c.l.b16 %v331
    %v925 = vunpack.c.h.b16 %v331
    %v926 = vunpack.c.l.b16 %v332
    %v927 = vunpack.c.h.b16 %v332
    %v928 = vunpack.c.l.b16 %v333
    %v929 = vunpack.c.h.b16 %v333
    %v930 = vunpack.c.l.b16 %v334
    %v931 = vunpack.c.h.b16 %v334
    %v932 = vunpack.c.l.b16 %v335
    %v933 = vunpack.c.h.b16 %v335
    %v934 = vpack.c.b16 %v554, %v550
    %v935 = vpack.c.b16 %v555, %v551
    %v936 = vpack.c.b16 %v556, %v552
    %v937 = vpack.c.b16 %v557, %v553
    %v938 = vpack.c.b16 %v562, %v558
    %v939 = vpack.c.b16 %v563, %v559
    %v940 = vpack.c.b16 %v564, %v560
    %v941 = vpack.c.b16 %v565, %v561
    %v942 = vpack.c.b16 %v570, %v566
    %v943 = vpack.c.b16 %v571, %v567
    %v944 = vpack.c.b16 %v572, %v568
    %v945 = vpack.c.b16 %v573, %v569
    %v946 = vpack.c.b16 %v578, %v574
    %v947 = vpack.c.b16 %v579, %v575
    %v948 = vpack.c.b16 %v580, %v576
    %v949 = vpack.c.b16 %v581, %v577
    %v950 = vpack.c.b16 %v586, %v582
    %v951 = vpack.c.b16 %v587, %v583
    %v952 = vpack.c.b16 %v588, %v584
    %v953 = vpack.c.b16 %v589, %v585
    %v954 = vpack.c.b16 %v594, %v590
    %v955 = vpack.c.b16 %v595, %v591
    %v956 = vpack.c.b16 %v596, %v592
    %v957 = vpack.c.b16 %v597, %v593
    %v958 = vpack.c.b16 %v602, %v598
    %v959 = vpack.c.b16 %v603, %v599
    %v960 = vpack.c.b16 %v604, %v600
    %v961 = vpack.c.b16 %v605, %v601
    %v962 = vpack.c.b16 %v610, %v606
    %v963 = vpack.c.b16 %v611, %v607
    %v964 = vpack.c.b16 %v612, %v608
    %v965 = vpack.c.b16 %v613, %v609
    %v966 = vpack.c.b16 %v618, %v614
    %v967 = vpack.c.b16 %v619, %v615
    %v968 = vpack.c.b16 %v620, %v616
    %v969 = vpack.c.b16 %v621, %v617
    %v970 = vpack.c.b16 %v626, %v622
    %v971 = vpack.c.b16 %v627, %v623
    %v972 = vpack.c.b16 %v628, %v624
    %v973 = vpack.c.b16 %v629, %v625
    %v974 = vpack.c.b16 %v634, %v630
    %v975 = vpack.c.b16 %v635, %v631
    %v976 = vpack.c.b16 %v636, %v632
    %v977 = vpack.c.b16 %v637, %v633
    %v978 = vpack.c.b16 %v642, %v638
    %v979 = vpack.c.b16 %v643, %v639
    %v980 = vpack.c.b16 %v644, %v640
    %v981 = vpack.c.b16 %v645, %v641
    %v982 = vpack.c.b16 %v650, %v646
    %v983 = vpack.c.b16 %v651, %v647
    %v984 = vpack.c.b16 %v652, %v648
    %v985 = vpack.c.b16 %v653, %v649
    %v986 = vpack.c.b16 %v658, %v654
    %v987 = vpack.c.b16 %v659, %v655
    %v988 = vpack.c.b16 %v660, %v656
    %v989 = vpack.c.b16 %v661, %v657
    %v990 = vpack.c.b16 %v666, %v662
    %v991 = vpack.c.b16 %v667, %v663
    %v992 = vpack.c.b16 %v668, %v664
    %v993 = vpack.c.b16 %v669, %v665
    %v994 = vpack.c.b16 %v674, %v670
    %v995 = vpack.c.b16 %v675, %v671
    %v996 = vpack.c.b16 %v676, %v672
    %v997 = vpack.c.b16 %v677, %v673
    %v998 = vpack.c.b16 %v682, %v678
    %v999 = vpack.c.b16 %v683, %v679
    %v1000 = vpack.c.b16 %v684, %v680
    %v1001 = vpack.c.b16 %v685, %v681
    %v1002 = vpack.c.b16 %v690, %v686
    %v1003 = vpack.c.b16 %v691, %v687
    %v1004 = vpack.c.b16 %v692, %v688
    %v1005 = vpack.c.b16 %v693, %v689
    %v1006 = vpack.c.b16 %v698, %v694
    %v1007 = vpack.c.b16 %v699, %v695
    %v1008 = vpack.c.b16 %v700, %v696
    %v1009 = vpack.c.b16 %v701, %v697
    %v1010 = vpack.c.b16 %v706, %v702
    %v1011 = vpack.c.b16 %v707, %v703
    %v1012 = vpack.c.b16 %v708, %v704
    %v1013 = vpack.c.b16 %v709, %v705
    %v1014 = vpack.c.b16 %v714, %v710
    %v1015 = vpack.c.b16 %v715, %v711
    %v1016 = vpack.c.b16 %v716, %v712
    %v1017 = vpack.c.b16 %v717, %v713
    %v1018 = vpack.c.b16 %v722, %v718
    %v1019 = vpack.c.b16 %v723, %v719
    %v1020 = vpack.c.b16 %v724, %v720
    %v1021 = vpack.c.b16 %v725, %v721
    %v1022 = vpack.c.b16 %v730, %v726
    %v1023 = vpack.c.b16 %v731, %v727
    %v1024 = vpack.c.b16 %v732, %v728
    %v1025 = vpack.c.b16 %v733, %v729
    %v1026 = vpack.c.b16 %v738, %v734
    %v1027 = vpack.c.b16 %v739, %v735
    %v1028 = vpack.c.b16 %v740, %v736
    %v1029 = vpack.c.b16 %v741, %v737
    %v1030 = vpack.c.b16 %v746, %v742
    %v1031 = vpack.c.b16 %v747, %v743
    %v1032 = vpack.c.b16 %v748, %v744
    %v1033 = vpack.c.b16 %v749, %v745
    %v1034 = vpack.c.b16 %v754, %v750
    %v1035 = vpack.c.b16 %v755, %v751
    %v1036 = vpack.c.b16 %v756, %v752
    %v1037 = vpack.c.b16 %v757, %v753
    %v1038 = vpack.c.b16 %v762, %v758
    %v1039 = vpack.c.b16 %v763, %v759
    %v1040 = vpack.c.b16 %v764, %v760
    %v1041 = vpack.c.b16 %v765, %v761
    %v1042 = vpack.c.b16 %v770, %v766
    %v1043 = vpack.c.b16 %v771, %v767
    %v1044 = vpack.c.b16 %v772, %v768
    %v1045 = vpack.c.b16 %v773, %v769
    %v1046 = vpack.c.b16 %v778, %v774
    %v1047 = vpack.c.b16 %v779, %v775
    %v1048 = vpack.c.b16 %v780, %v776
    %v1049 = vpack.c.b16 %v781, %v777
    %v1050 = vpack.c.b16 %v786, %v782
    %v1051 = vpack.c.b16 %v787, %v783
    %v1052 = vpack.c.b16 %v788, %v784
    %v1053 = vpack.c.b16 %v789, %v785
    %v1054 = vpack.c.b16 %v794, %v790
    %v1055 = vpack.c.b16 %v795, %v791
    %v1056 = vpack.c.b16 %v796, %v792
    %v1057 = vpack.c.b16 %v797, %v793
    %v1058 = vpack.c.b16 %v802, %v798
    %v1059 = vpack.c.b16 %v803, %v799
    %v1060 = vpack.c.b16 %v804, %v800
    %v1061 = vpack.c.b16 %v805, %v801
    %v1062 = vpack.c.b16 %v810, %v806
    %v1063 = vpack.c.b16 %v811, %v807
    %v1064 = vpack.c.b16 %v812, %v808
    %v1065 = vpack.c.b16 %v813, %v809
    %v1066 = vpack.c.b16 %v818, %v814
    %v1067 = vpack.c.b16 %v819, %v815
    %v1068 = vpack.c.b16 %v820, %v816
    %v1069 = vpack.c.b16 %v821, %v817
    %v1070 = vpack.c.b16 %v826, %v822
    %v1071 = vpack.c.b16 %v827, %v823
    %v1072 = vpack.c.b16 %v828, %v824
    %v1073 = vpack.c.b16 %v829, %v825
    %v1074 = vpack.c.b16 %v834, %v830
    %v1075 = vpack.c.b16 %v835, %v831
    %v1076 = vpack.c.b16 %v836, %v832
    %v1077 = vpack.c.b16 %v837, %v833
    %v1078 = vpack.c.b16 %v842, %v838
    %v1079 = vpack.c.b16 %v843, %v839
    %v1080 = vpack.c.b16 %v844, %v840
    %v1081 = vpack.c.b16 %v845, %v841
    %v1082 = vpack.c.b16 %v850, %v846
    %v1083 = vpack.c.b16 %v851, %v847
    %v1084 = vpack.c.b16 %v852, %v848
    %v1085 = vpack.c.b16 %v853, %v849
    %v1086 = vpack.c.b16 %v858, %v854
    %v1087 = vpack.c.b16 %v859, %v855
    %v1088 = vpack.c.b16 %v860, %v856
    %v1089 = vpack.c.b16 %v861, %v857
    %v1090 = vpack.c.b16 %v866, %v862
    %v1091 = vpack.c.b16 %v867, %v863
    %v1092 = vpack.c.b16 %v868, %v864
    %v1093 = vpack.c.b16 %v869, %v865
    %v1094 = vpack.c.b16 %v874, %v870
    %v1095 = vpack.c.b16 %v875, %v871
    %v1096 = vpack.c.b16 %v876, %v872
    %v1097 = vpack.c.b16 %v877, %v873
    %v1098 = vpack.c.b16 %v882, %v878
    %v1099 = vpack.c.b16 %v883, %v879
    %v1100 = vpack.c.b16 %v884, %v880
    %v1101 = vpack.c.b16 %v885, %v881
    %v1102 = vpack.c.b16 %v890, %v886
    %v1103 = vpack.c.b16 %v891, %v887
    %v1104 = vpack.c.b16 %v892, %v888
    %v1105 = vpack.c.b16 %v893, %v889
    %v1106 = vpack.c.b16 %v898, %v894
    %v1107 = vpack.c.b16 %v899, %v895
    %v1108 = vpack.c.b16 %v900, %v896
    %v1109 = vpack.c.b16 %v901, %v897
    %v1110 = vpack.c.b16 %v906, %v902
    %v1111 = vpack.c.b16 %v907, %v903
    %v1112 = vpack.c.b16 %v908, %v904
    %v1113 = vpack.c.b16 %v909, %v905
    %v1114 = vpack.c.b16 %v914, %v910
    %v1115 = vpack.c.b16 %v915, %v911
    %v1116 = vpack.c.b16 %v916, %v912
    %v1117 = vpack.c.b16 %v917, %v913
    %v1118 = vpack.c.b16 %v922, %v918
    %v1119 = vpack.c.b16 %v923, %v919
    %v1120 = vpack.c.b16 %v924, %v920
    %v1121 = vpack.c.b16 %v925, %v921
    %v1122 = vpack.c.b16 %v930, %v926
    %v1123 = vpack.c.b16 %v931, %v927
    %v1124 = vpack.c.b16 %v932, %v928
    %v1125 = vpack.c.b16 %v933, %v929
    %1318 = vmatprep.subr.bf16.mxu0 %v963
    %1319 = vmatpush1.bf16.msra.mxu0 %v962
    %1320 = vmatprep.subr.bf16.mxu0 %v959
    %1321 = vmatpush1.bf16.msra.mxu0 %v958
    %1322 = vmatprep.subr.bf16.mxu0 %v955
    %1323 = vmatpush1.bf16.msra.mxu0 %v954
    %1324 = vmatprep.subr.bf16.mxu0 %v951
    %1325 = vmatpush1.bf16.msra.mxu0 %v950
    %1326 = vmatprep.subr.bf16.mxu0 %v947
    %1327 = vmatpush1.bf16.msra.mxu0 %v946
    %1328 = vmatprep.subr.bf16.mxu0 %v943
    %1329 = vmatpush1.bf16.msra.mxu0 %v942
    %1330 = vmatprep.subr.bf16.mxu0 %v939
    %1331 = vmatpush1.bf16.msra.mxu0 %v938
    %1332 = vmatprep.subr.bf16.mxu0 %v935
    %1333 = vmatpush1.bf16.msra.mxu0 %v934
    %1334 = vmatprep.subr.bf16.mxu0 %v995
    %1335 = vmatpush2.bf16.msra.mxu0 %v994
    %1336 = vmatprep.subr.bf16.mxu0 %v991
    %1337 = vmatpush2.bf16.msra.mxu0 %v990
    %1338 = vmatprep.subr.bf16.mxu0 %v987
    %1339 = vmatpush2.bf16.msra.mxu0 %v986
    %1340 = vmatprep.subr.bf16.mxu0 %v983
    %1341 = vmatpush2.bf16.msra.mxu0 %v982
    %1342 = vmatprep.subr.bf16.mxu0 %v979
    %1343 = vmatpush2.bf16.msra.mxu0 %v978
    %1344 = vmatprep.subr.bf16.mxu0 %v975
    %1345 = vmatpush2.bf16.msra.mxu0 %v974
    %1346 = vmatprep.subr.bf16.mxu0 %v971
    %1347 = vmatpush2.bf16.msra.mxu0 %v970
    %1348 = vmatprep.subr.bf16.mxu0 %v967
    %1349 = vmatpush2.bf16.msra.mxu0 %v966
    %1350 = vmatprep.mubr.bf16.mxu0 %v139
    %1351 = vmatmul.mubr.bf16.gmra.mxu0 %v138
    %v1352 = vpop.f32.mrf.mxu0
    %v1353 = vadd.f32 %v341, %v1352
    %v1354 = vpop.f32.mrf.mxu0
    %v1355 = vadd.f32 %v345, %v1354
    %v1356 = vpop.f32.mrf.mxu0
    %v1357 = vpop.f32.mrf.mxu0
    %1358 = vdwg.mxu0
    %1359 = vmatprep.subr.bf16.mxu0 %v1027
    %1360 = vmatpush1.bf16.msra.mxu0 %v1026
    %1361 = vmatprep.subr.bf16.mxu0 %v1023
    %1362 = vmatpush1.bf16.msra.mxu0 %v1022
    %1363 = vmatprep.subr.bf16.mxu0 %v1019
    %1364 = vmatpush1.bf16.msra.mxu0 %v1018
    %1365 = vmatprep.subr.bf16.mxu0 %v1015
    %1366 = vmatpush1.bf16.msra.mxu0 %v1014
    %1367 = vmatprep.subr.bf16.mxu0 %v1011
    %1368 = vmatpush1.bf16.msra.mxu0 %v1010
    %1369 = vmatprep.subr.bf16.mxu0 %v1007
    %1370 = vmatpush1.bf16.msra.mxu0 %v1006
    %1371 = vmatprep.subr.bf16.mxu0 %v1003
    %1372 = vmatpush1.bf16.msra.mxu0 %v1002
    %1373 = vmatprep.subr.bf16.mxu0 %v999
    %1374 = vmatpush1.bf16.msra.mxu0 %v998
    %1375 = vmatprep.subr.bf16.mxu0 %v1059
    %1376 = vmatpush2.bf16.msra.mxu0 %v1058
    %1377 = vmatprep.subr.bf16.mxu0 %v1055
    %1378 = vmatpush2.bf16.msra.mxu0 %v1054
    %1379 = vmatprep.subr.bf16.mxu0 %v1051
    %1380 = vmatpush2.bf16.msra.mxu0 %v1050
    %1381 = vmatprep.subr.bf16.mxu0 %v1047
    %1382 = vmatpush2.bf16.msra.mxu0 %v1046
    %1383 = vmatprep.subr.bf16.mxu0 %v1043
    %1384 = vmatpush2.bf16.msra.mxu0 %v1042
    %1385 = vmatprep.subr.bf16.mxu0 %v1039
    %1386 = vmatpush2.bf16.msra.mxu0 %v1038
    %1387 = vmatprep.subr.bf16.mxu0 %v1035
    %1388 = vmatpush2.bf16.msra.mxu0 %v1034
    %1389 = vmatprep.subr.bf16.mxu0 %v1031
    %1390 = vmatpush2.bf16.msra.mxu0 %v1030
    %1391 = vmatprep.mubr.bf16.mxu0 %v141
    %1392 = vmatmul.mubr.bf16.gmra.mxu0 %v140
    %v1393 = vpop.f32.mrf.mxu0
    %v1394 = vadd.f32 %v1353, %v1393
    %v1395 = vpop.f32.mrf.mxu0
    %v1396 = vadd.f32 %v1355, %v1395
    %v1397 = vpop.f32.mrf.mxu0
    %v1398 = vpop.f32.mrf.mxu0
    %1399 = vdwg.mxu0
    %1400 = vmatprep.subr.bf16.mxu0 %v1091
    %1401 = vmatpush1.bf16.msra.mxu0 %v1090
    %1402 = vmatprep.subr.bf16.mxu0 %v1087
    %1403 = vmatpush1.bf16.msra.mxu0 %v1086
    %1404 = vmatprep.subr.bf16.mxu0 %v1083
    %1405 = vmatpush1.bf16.msra.mxu0 %v1082
    %1406 = vmatprep.subr.bf16.mxu0 %v1079
    %1407 = vmatpush1.bf16.msra.mxu0 %v1078
    %1408 = vmatprep.subr.bf16.mxu0 %v1075
    %1409 = vmatpush1.bf16.msra.mxu0 %v1074
    %1410 = vmatprep.subr.bf16.mxu0 %v1071
    %1411 = vmatpush1.bf16.msra.mxu0 %v1070
    %1412 = vmatprep.subr.bf16.mxu0 %v1067
    %1413 = vmatpush1.bf16.msra.mxu0 %v1066
    %1414 = vmatprep.subr.bf16.mxu0 %v1063
    %1415 = vmatpush1.bf16.msra.mxu0 %v1062
    %1416 = vmatprep.subr.bf16.mxu0 %v1123
    %1417 = vmatpush2.bf16.msra.mxu0 %v1122
    %1418 = vmatprep.subr.bf16.mxu0 %v1119
    %1419 = vmatpush2.bf16.msra.mxu0 %v1118
    %1420 = vmatprep.subr.bf16.mxu0 %v1115
    %1421 = vmatpush2.bf16.msra.mxu0 %v1114
    %1422 = vmatprep.subr.bf16.mxu0 %v1111
    %1423 = vmatpush2.bf16.msra.mxu0 %v1110
    %1424 = vmatprep.subr.bf16.mxu0 %v1107
    %1425 = vmatpush2.bf16.msra.mxu0 %v1106
    %1426 = vmatprep.subr.bf16.mxu0 %v1103
    %1427 = vmatpush2.bf16.msra.mxu0 %v1102
    %1428 = vmatprep.subr.bf16.mxu0 %v1099
    %1429 = vmatpush2.bf16.msra.mxu0 %v1098
    %1430 = vmatprep.subr.bf16.mxu0 %v1095
    %1431 = vmatpush2.bf16.msra.mxu0 %v1094
    %1432 = vmatprep.mubr.bf16.mxu0 %v143
    %1433 = vmatmul.mubr.bf16.gmra.mxu0 %v142
    %v1434 = vpop.f32.mrf.mxu0
    %v1435 = vadd.f32 %v1394, %v1434
    %v1436 = vpop.f32.mrf.mxu0
    %v1437 = vadd.f32 %v1396, %v1436
    %v1438 = vpop.f32.mrf.mxu0
    %v1439 = vpop.f32.mrf.mxu0
    %1440 = vdwg.mxu0
    %1441 = vmatprep.subr.bf16.mxu0 %v965
    %1442 = vmatpush1.bf16.msra.mxu0 %v964
    %1443 = vmatprep.subr.bf16.mxu0 %v961
    %1444 = vmatpush1.bf16.msra.mxu0 %v960
    %1445 = vmatprep.subr.bf16.mxu0 %v957
    %1446 = vmatpush1.bf16.msra.mxu0 %v956
    %1447 = vmatprep.subr.bf16.mxu0 %v953
    %1448 = vmatpush1.bf16.msra.mxu0 %v952
    %1449 = vmatprep.subr.bf16.mxu0 %v949
    %1450 = vmatpush1.bf16.msra.mxu0 %v948
    %1451 = vmatprep.subr.bf16.mxu0 %v945
    %1452 = vmatpush1.bf16.msra.mxu0 %v944
    %1453 = vmatprep.subr.bf16.mxu0 %v941
    %1454 = vmatpush1.bf16.msra.mxu0 %v940
    %1455 = vmatprep.subr.bf16.mxu0 %v937
    %1456 = vmatpush1.bf16.msra.mxu0 %v936
    %1457 = vmatprep.subr.bf16.mxu0 %v997
    %1458 = vmatpush2.bf16.msra.mxu0 %v996
    %1459 = vmatprep.subr.bf16.mxu0 %v993
    %1460 = vmatpush2.bf16.msra.mxu0 %v992
    %1461 = vmatprep.subr.bf16.mxu0 %v989
    %1462 = vmatpush2.bf16.msra.mxu0 %v988
    %1463 = vmatprep.subr.bf16.mxu0 %v985
    %1464 = vmatpush2.bf16.msra.mxu0 %v984
    %1465 = vmatprep.subr.bf16.mxu0 %v981
    %1466 = vmatpush2.bf16.msra.mxu0 %v980
    %1467 = vmatprep.subr.bf16.mxu0 %v977
    %1468 = vmatpush2.bf16.msra.mxu0 %v976
    %1469 = vmatprep.subr.bf16.mxu0 %v973
    %1470 = vmatpush2.bf16.msra.mxu0 %v972
    %1471 = vmatprep.subr.bf16.mxu0 %v969
    %1472 = vmatpush2.bf16.msra.mxu0 %v968
    %1473 = vmatprep.mubr.bf16.mxu0 %v139
    %1474 = vmatmul.mubr.bf16.gmra.mxu0 %v138
    %v1475 = vpop.f32.mrf.mxu0
    %v1476 = vadd.f32 %v349, %v1475
    %v1477 = vpop.f32.mrf.mxu0
    %v1478 = vadd.f32 %v353, %v1477
    %v1479 = vpop.f32.mrf.mxu0
    %v1480 = vpop.f32.mrf.mxu0
    %1481 = vdwg.mxu0
    %1482 = vmatprep.subr.bf16.mxu0 %v1029
    %1483 = vmatpush1.bf16.msra.mxu0 %v1028
    %1484 = vmatprep.subr.bf16.mxu0 %v1025
    %1485 = vmatpush1.bf16.msra.mxu0 %v1024
    %1486 = vmatprep.subr.bf16.mxu0 %v1021
    %1487 = vmatpush1.bf16.msra.mxu0 %v1020
    %1488 = vmatprep.subr.bf16.mxu0 %v1017
    %1489 = vmatpush1.bf16.msra.mxu0 %v1016
    %1490 = vmatprep.subr.bf16.mxu0 %v1013
    %1491 = vmatpush1.bf16.msra.mxu0 %v1012
    %1492 = vmatprep.subr.bf16.mxu0 %v1009
    %1493 = vmatpush1.bf16.msra.mxu0 %v1008
    %1494 = vmatprep.subr.bf16.mxu0 %v1005
    %1495 = vmatpush1.bf16.msra.mxu0 %v1004
    %1496 = vmatprep.subr.bf16.mxu0 %v1001
    %1497 = vmatpush1.bf16.msra.mxu0 %v1000
    %1498 = vmatprep.subr.bf16.mxu0 %v1061
    %1499 = vmatpush2.bf16.msra.mxu0 %v1060
    %1500 = vmatprep.subr.bf16.mxu0 %v1057
    %1501 = vmatpush2.bf16.msra.mxu0 %v1056
    %1502 = vmatprep.subr.bf16.mxu0 %v1053
    %1503 = vmatpush2.bf16.msra.mxu0 %v1052
    %1504 = vmatprep.subr.bf16.mxu0 %v1049
    %1505 = vmatpush2.bf16.msra.mxu0 %v1048
    %1506 = vmatprep.subr.bf16.mxu0 %v1045
    %1507 = vmatpush2.bf16.msra.mxu0 %v1044
    %1508 = vmatprep.subr.bf16.mxu0 %v1041
    %1509 = vmatpush2.bf16.msra.mxu0 %v1040
    %1510 = vmatprep.subr.bf16.mxu0 %v1037
    %1511 = vmatpush2.bf16.msra.mxu0 %v1036
    %1512 = vmatprep.subr.bf16.mxu0 %v1033
    %1513 = vmatpush2.bf16.msra.mxu0 %v1032
    %1514 = vmatprep.mubr.bf16.mxu0 %v141
    %1515 = vmatmul.mubr.bf16.gmra.mxu0 %v140
    %v1516 = vpop.f32.mrf.mxu0
    %v1517 = vadd.f32 %v1476, %v1516
    %v1518 = vpop.f32.mrf.mxu0
    %v1519 = vadd.f32 %v1478, %v1518
    %v1520 = vpop.f32.mrf.mxu0
    %v1521 = vpop.f32.mrf.mxu0
    %1522 = vdwg.mxu0
    %1523 = vmatprep.subr.bf16.mxu0 %v1093
    %1524 = vmatpush1.bf16.msra.mxu0 %v1092
    %1525 = vmatprep.subr.bf16.mxu0 %v1089
    %1526 = vmatpush1.bf16.msra.mxu0 %v1088
    %1527 = vmatprep.subr.bf16.mxu0 %v1085
    %1528 = vmatpush1.bf16.msra.mxu0 %v1084
    %1529 = vmatprep.subr.bf16.mxu0 %v1081
    %1530 = vmatpush1.bf16.msra.mxu0 %v1080
    %1531 = vmatprep.subr.bf16.mxu0 %v1077
    %1532 = vmatpush1.bf16.msra.mxu0 %v1076
    %1533 = vmatprep.subr.bf16.mxu0 %v1073
    %1534 = vmatpush1.bf16.msra.mxu0 %v1072
    %1535 = vmatprep.subr.bf16.mxu0 %v1069
    %1536 = vmatpush1.bf16.msra.mxu0 %v1068
    %1537 = vmatprep.subr.bf16.mxu0 %v1065
    %1538 = vmatpush1.bf16.msra.mxu0 %v1064
    %1539 = vmatprep.subr.bf16.mxu0 %v1125
    %1540 = vmatpush2.bf16.msra.mxu0 %v1124
    %1541 = vmatprep.subr.bf16.mxu0 %v1121
    %1542 = vmatpush2.bf16.msra.mxu0 %v1120
    %1543 = vmatprep.subr.bf16.mxu0 %v1117
    %1544 = vmatpush2.bf16.msra.mxu0 %v1116
    %1545 = vmatprep.subr.bf16.mxu0 %v1113
    %1546 = vmatpush2.bf16.msra.mxu0 %v1112
    %1547 = vmatprep.subr.bf16.mxu0 %v1109
    %1548 = vmatpush2.bf16.msra.mxu0 %v1108
    %1549 = vmatprep.subr.bf16.mxu0 %v1105
    %1550 = vmatpush2.bf16.msra.mxu0 %v1104
    %1551 = vmatprep.subr.bf16.mxu0 %v1101
    %1552 = vmatpush2.bf16.msra.mxu0 %v1100
    %1553 = vmatprep.subr.bf16.mxu0 %v1097
    %1554 = vmatpush2.bf16.msra.mxu0 %v1096
    %1555 = vmatprep.mubr.bf16.mxu0 %v143
    %1556 = vmatmul.mubr.bf16.gmra.mxu0 %v142
    %v1557 = vpop.f32.mrf.mxu0
    %v1558 = vadd.f32 %v1517, %v1557
    %v1559 = vpop.f32.mrf.mxu0
    %v1560 = vadd.f32 %v1519, %v1559
    %v1561 = vpop.f32.mrf.mxu0
    %v1562 = vpop.f32.mrf.mxu0
    %1563 = vdwg.mxu0
    %v1564 = vmax.f32 %v1435, 0.0
    %v1565 = vmax.f32 %v1437, 0.0
    %v1566 = vmax.f32 %v1558, 0.0
    %v1567 = vmax.f32 %v1560, 0.0
    %v1568 = vpack.c.bf16 %v1564, %v1564
    %v1569 = vpack.c.bf16 %v1565, %v1565
    %v1570 = vpack.c.bf16 %v1566, %v1566
    %v1571 = vpack.c.bf16 %v1567, %v1567
    %v1572 = vld [vmem:[#allocation4] sm:$0xff]
    %v1573 = vld [vmem:[#allocation4 + $0x8] sm:$0xff]
    %v1574 = vld [vmem:[#allocation4 + $0x10] sm:$0xff]
    %v1575 = vld [vmem:[#allocation4 + $0x18] sm:$0xff]
    %v1576 = vld [vmem:[#allocation4 + $0x20] sm:$0xff]
    %v1577 = vld [vmem:[#allocation4 + $0x28] sm:$0xff]
    %v1578 = vld [vmem:[#allocation4 + $0x30] sm:$0xff]
    %v1579 = vld [vmem:[#allocation4 + $0x38] sm:$0xff]
    %v1580 = vld [vmem:[#allocation4 + $0x40] sm:$0xff]
    %v1581 = vld [vmem:[#allocation4 + $0x48] sm:$0xff]
    %v1582 = vld [vmem:[#allocation4 + $0x50] sm:$0xff]
    %v1583 = vld [vmem:[#allocation4 + $0x58] sm:$0xff]
    %v1584 = vld [vmem:[#allocation4 + $0x60] sm:$0xff]
    %v1585 = vld [vmem:[#allocation4 + $0x68] sm:$0xff]
    %v1586 = vld [vmem:[#allocation4 + $0x70] sm:$0xff]
    %v1587 = vld [vmem:[#allocation4 + $0x78] sm:$0xff]
    %v1588 = vld [vmem:[#allocation4 + $0x80] sm:$0xff]
    %v1589 = vld [vmem:[#allocation4 + $0x88] sm:$0xff]
    %v1590 = vld [vmem:[#allocation4 + $0x90] sm:$0xff]
    %v1591 = vld [vmem:[#allocation4 + $0x98] sm:$0xff]
    %v1592 = vld [vmem:[#allocation4 + $0xa0] sm:$0xff]
    %v1593 = vld [vmem:[#allocation4 + $0xa8] sm:$0xff]
    %v1594 = vld [vmem:[#allocation4 + $0xb0] sm:$0xff]
    %v1595 = vld [vmem:[#allocation4 + $0xb8] sm:$0xff]
    %v1596 = vld [vmem:[#allocation4 + $0xc0] sm:$0xff]
    %v1597 = vld [vmem:[#allocation4 + $0xc8] sm:$0xff]
    %v1598 = vld [vmem:[#allocation4 + $0xd0] sm:$0xff]
    %v1599 = vld [vmem:[#allocation4 + $0xd8] sm:$0xff]
    %v1600 = vld [vmem:[#allocation4 + $0xe0] sm:$0xff]
    %v1601 = vld [vmem:[#allocation4 + $0xe8] sm:$0xff]
    %v1602 = vld [vmem:[#allocation4 + $0xf0] sm:$0xff]
    %v1603 = vld [vmem:[#allocation4 + $0xf8] sm:$0xff]
    %v1604 = vld [vmem:[#allocation4 + $0x100] sm:$0xff]
    %v1605 = vld [vmem:[#allocation4 + $0x108] sm:$0xff]
    %v1606 = vld [vmem:[#allocation4 + $0x110] sm:$0xff]
    %v1607 = vld [vmem:[#allocation4 + $0x118] sm:$0xff]
    %v1608 = vld [vmem:[#allocation4 + $0x120] sm:$0xff]
    %v1609 = vld [vmem:[#allocation4 + $0x128] sm:$0xff]
    %v1610 = vld [vmem:[#allocation4 + $0x130] sm:$0xff]
    %v1611 = vld [vmem:[#allocation4 + $0x138] sm:$0xff]
    %v1612 = vld [vmem:[#allocation4 + $0x140] sm:$0xff]
    %v1613 = vld [vmem:[#allocation4 + $0x148] sm:$0xff]
    %v1614 = vld [vmem:[#allocation4 + $0x150] sm:$0xff]
    %v1615 = vld [vmem:[#allocation4 + $0x158] sm:$0xff]
    %v1616 = vld [vmem:[#allocation4 + $0x160] sm:$0xff]
    %v1617 = vld [vmem:[#allocation4 + $0x168] sm:$0xff]
    %v1618 = vld [vmem:[#allocation4 + $0x170] sm:$0xff]
    %v1619 = vld [vmem:[#allocation4 + $0x178] sm:$0xff]
    %v1620 = vld [vmem:[#allocation4 + $0x180] sm:$0xff]
    %v1621 = vld [vmem:[#allocation4 + $0x188] sm:$0xff]
    %v1622 = vld [vmem:[#allocation4 + $0x190] sm:$0xff]
    %v1623 = vld [vmem:[#allocation4 + $0x198] sm:$0xff]
    %v1624 = vld [vmem:[#allocation4 + $0x1a0] sm:$0xff]
    %v1625 = vld [vmem:[#allocation4 + $0x1a8] sm:$0xff]
    %v1626 = vld [vmem:[#allocation4 + $0x1b0] sm:$0xff]
    %v1627 = vld [vmem:[#allocation4 + $0x1b8] sm:$0xff]
    %v1628 = vld [vmem:[#allocation4 + $0x1c0] sm:$0xff]
    %v1629 = vld [vmem:[#allocation4 + $0x1c8] sm:$0xff]
    %v1630 = vld [vmem:[#allocation4 + $0x1d0] sm:$0xff]
    %v1631 = vld [vmem:[#allocation4 + $0x1d8] sm:$0xff]
    %v1632 = vld [vmem:[#allocation4 + $0x1e0] sm:$0xff]
    %v1633 = vld [vmem:[#allocation4 + $0x1e8] sm:$0xff]
    %v1634 = vld [vmem:[#allocation4 + $0x1f0] sm:$0xff]
    %v1635 = vld [vmem:[#allocation4 + $0x1f8] sm:$0xff]
    %v1636 = vld [vmem:[%s6] sm:$0x3]
    %v1638 = vlaneseq
    %v1639 = vshrl.u32 %v1638, 7
    %v1640 = vsub.s32 0, %v1639
    %v1641 = vrot.slane %v1636, %v1640
    %v1642 = vlaneseq
    %v1643 = vshrl.u32 %v1642, 7
    %v1644 = vsub.s32 1, %v1643
    %v1645 = vrot.slane %v1636, %v1644
    %v1712 = vunpack.c.l.b16 %v1572
    %v1713 = vunpack.c.h.b16 %v1572
    %v1714 = vunpack.c.l.b16 %v1573
    %v1715 = vunpack.c.h.b16 %v1573
    %v1716 = vunpack.c.l.b16 %v1574
    %v1717 = vunpack.c.h.b16 %v1574
    %v1718 = vunpack.c.l.b16 %v1575
    %v1719 = vunpack.c.h.b16 %v1575
    %v1720 = vunpack.c.l.b16 %v1576
    %v1721 = vunpack.c.h.b16 %v1576
    %v1722 = vunpack.c.l.b16 %v1577
    %v1723 = vunpack.c.h.b16 %v1577
    %v1724 = vunpack.c.l.b16 %v1578
    %v1725 = vunpack.c.h.b16 %v1578
    %v1726 = vunpack.c.l.b16 %v1579
    %v1727 = vunpack.c.h.b16 %v1579
    %v1728 = vunpack.c.l.b16 %v1580
    %v1729 = vunpack.c.h.b16 %v1580
    %v1730 = vunpack.c.l.b16 %v1581
    %v1731 = vunpack.c.h.b16 %v1581
    %v1732 = vunpack.c.l.b16 %v1582
    %v1733 = vunpack.c.h.b16 %v1582
    %v1734 = vunpack.c.l.b16 %v1583
    %v1735 = vunpack.c.h.b16 %v1583
    %v1736 = vunpack.c.l.b16 %v1584
    %v1737 = vunpack.c.h.b16 %v1584
    %v1738 = vunpack.c.l.b16 %v1585
    %v1739 = vunpack.c.h.b16 %v1585
    %v1740 = vunpack.c.l.b16 %v1586
    %v1741 = vunpack.c.h.b16 %v1586
    %v1742 = vunpack.c.l.b16 %v1587
    %v1743 = vunpack.c.h.b16 %v1587
    %v1744 = vunpack.c.l.b16 %v1588
    %v1745 = vunpack.c.h.b16 %v1588
    %v1746 = vunpack.c.l.b16 %v1589
    %v1747 = vunpack.c.h.b16 %v1589
    %v1748 = vunpack.c.l.b16 %v1590
    %v1749 = vunpack.c.h.b16 %v1590
    %v1750 = vunpack.c.l.b16 %v1591
    %v1751 = vunpack.c.h.b16 %v1591
    %v1752 = vunpack.c.l.b16 %v1592
    %v1753 = vunpack.c.h.b16 %v1592
    %v1754 = vunpack.c.l.b16 %v1593
    %v1755 = vunpack.c.h.b16 %v1593
    %v1756 = vunpack.c.l.b16 %v1594
    %v1757 = vunpack.c.h.b16 %v1594
    %v1758 = vunpack.c.l.b16 %v1595
    %v1759 = vunpack.c.h.b16 %v1595
    %v1760 = vunpack.c.l.b16 %v1596
    %v1761 = vunpack.c.h.b16 %v1596
    %v1762 = vunpack.c.l.b16 %v1597
    %v1763 = vunpack.c.h.b16 %v1597
    %v1764 = vunpack.c.l.b16 %v1598
    %v1765 = vunpack.c.h.b16 %v1598
    %v1766 = vunpack.c.l.b16 %v1599
    %v1767 = vunpack.c.h.b16 %v1599
    %v1768 = vunpack.c.l.b16 %v1600
    %v1769 = vunpack.c.h.b16 %v1600
    %v1770 = vunpack.c.l.b16 %v1601
    %v1771 = vunpack.c.h.b16 %v1601
    %v1772 = vunpack.c.l.b16 %v1602
    %v1773 = vunpack.c.h.b16 %v1602
    %v1774 = vunpack.c.l.b16 %v1603
    %v1775 = vunpack.c.h.b16 %v1603
    %v1776 = vunpack.c.l.b16 %v1604
    %v1777 = vunpack.c.h.b16 %v1604
    %v1778 = vunpack.c.l.b16 %v1605
    %v1779 = vunpack.c.h.b16 %v1605
    %v1780 = vunpack.c.l.b16 %v1606
    %v1781 = vunpack.c.h.b16 %v1606
    %v1782 = vunpack.c.l.b16 %v1607
    %v1783 = vunpack.c.h.b16 %v1607
    %v1784 = vunpack.c.l.b16 %v1608
    %v1785 = vunpack.c.h.b16 %v1608
    %v1786 = vunpack.c.l.b16 %v1609
    %v1787 = vunpack.c.h.b16 %v1609
    %v1788 = vunpack.c.l.b16 %v1610
    %v1789 = vunpack.c.h.b16 %v1610
    %v1790 = vunpack.c.l.b16 %v1611
    %v1791 = vunpack.c.h.b16 %v1611
    %v1792 = vunpack.c.l.b16 %v1612
    %v1793 = vunpack.c.h.b16 %v1612
    %v1794 = vunpack.c.l.b16 %v1613
    %v1795 = vunpack.c.h.b16 %v1613
    %v1796 = vunpack.c.l.b16 %v1614
    %v1797 = vunpack.c.h.b16 %v1614
    %v1798 = vunpack.c.l.b16 %v1615
    %v1799 = vunpack.c.h.b16 %v1615
    %v1800 = vunpack.c.l.b16 %v1616
    %v1801 = vunpack.c.h.b16 %v1616
    %v1802 = vunpack.c.l.b16 %v1617
    %v1803 = vunpack.c.h.b16 %v1617
    %v1804 = vunpack.c.l.b16 %v1618
    %v1805 = vunpack.c.h.b16 %v1618
    %v1806 = vunpack.c.l.b16 %v1619
    %v1807 = vunpack.c.h.b16 %v1619
    %v1808 = vunpack.c.l.b16 %v1620
    %v1809 = vunpack.c.h.b16 %v1620
    %v1810 = vunpack.c.l.b16 %v1621
    %v1811 = vunpack.c.h.b16 %v1621
    %v1812 = vunpack.c.l.b16 %v1622
    %v1813 = vunpack.c.h.b16 %v1622
    %v1814 = vunpack.c.l.b16 %v1623
    %v1815 = vunpack.c.h.b16 %v1623
    %v1816 = vunpack.c.l.b16 %v1624
    %v1817 = vunpack.c.h.b16 %v1624
    %v1818 = vunpack.c.l.b16 %v1625
    %v1819 = vunpack.c.h.b16 %v1625
    %v1820 = vunpack.c.l.b16 %v1626
    %v1821 = vunpack.c.h.b16 %v1626
    %v1822 = vunpack.c.l.b16 %v1627
    %v1823 = vunpack.c.h.b16 %v1627
    %v1824 = vunpack.c.l.b16 %v1628
    %v1825 = vunpack.c.h.b16 %v1628
    %v1826 = vunpack.c.l.b16 %v1629
    %v1827 = vunpack.c.h.b16 %v1629
    %v1828 = vunpack.c.l.b16 %v1630
    %v1829 = vunpack.c.h.b16 %v1630
    %v1830 = vunpack.c.l.b16 %v1631
    %v1831 = vunpack.c.h.b16 %v1631
    %v1832 = vunpack.c.l.b16 %v1632
    %v1833 = vunpack.c.h.b16 %v1632
    %v1834 = vunpack.c.l.b16 %v1633
    %v1835 = vunpack.c.h.b16 %v1633
    %v1836 = vunpack.c.l.b16 %v1634
    %v1837 = vunpack.c.h.b16 %v1634
    %v1838 = vunpack.c.l.b16 %v1635
    %v1839 = vunpack.c.h.b16 %v1635
    %v1840 = vpack.c.b16 %v1714, %v1712
    %v1841 = vpack.c.b16 %v1715, %v1713
    %v1842 = vpack.c.b16 %v1718, %v1716
    %v1843 = vpack.c.b16 %v1719, %v1717
    %v1844 = vpack.c.b16 %v1722, %v1720
    %v1845 = vpack.c.b16 %v1723, %v1721
    %v1846 = vpack.c.b16 %v1726, %v1724
    %v1847 = vpack.c.b16 %v1727, %v1725
    %v1848 = vpack.c.b16 %v1730, %v1728
    %v1849 = vpack.c.b16 %v1731, %v1729
    %v1850 = vpack.c.b16 %v1734, %v1732
    %v1851 = vpack.c.b16 %v1735, %v1733
    %v1852 = vpack.c.b16 %v1738, %v1736
    %v1853 = vpack.c.b16 %v1739, %v1737
    %v1854 = vpack.c.b16 %v1742, %v1740
    %v1855 = vpack.c.b16 %v1743, %v1741
    %v1856 = vpack.c.b16 %v1746, %v1744
    %v1857 = vpack.c.b16 %v1747, %v1745
    %v1858 = vpack.c.b16 %v1750, %v1748
    %v1859 = vpack.c.b16 %v1751, %v1749
    %v1860 = vpack.c.b16 %v1754, %v1752
    %v1861 = vpack.c.b16 %v1755, %v1753
    %v1862 = vpack.c.b16 %v1758, %v1756
    %v1863 = vpack.c.b16 %v1759, %v1757
    %v1864 = vpack.c.b16 %v1762, %v1760
    %v1865 = vpack.c.b16 %v1763, %v1761
    %v1866 = vpack.c.b16 %v1766, %v1764
    %v1867 = vpack.c.b16 %v1767, %v1765
    %v1868 = vpack.c.b16 %v1770, %v1768
    %v1869 = vpack.c.b16 %v1771, %v1769
    %v1870 = vpack.c.b16 %v1774, %v1772
    %v1871 = vpack.c.b16 %v1775, %v1773
    %v1872 = vpack.c.b16 %v1778, %v1776
    %v1873 = vpack.c.b16 %v1779, %v1777
    %v1874 = vpack.c.b16 %v1782, %v1780
    %v1875 = vpack.c.b16 %v1783, %v1781
    %v1876 = vpack.c.b16 %v1786, %v1784
    %v1877 = vpack.c.b16 %v1787, %v1785
    %v1878 = vpack.c.b16 %v1790, %v1788
    %v1879 = vpack.c.b16 %v1791, %v1789
    %v1880 = vpack.c.b16 %v1794, %v1792
    %v1881 = vpack.c.b16 %v1795, %v1793
    %v1882 = vpack.c.b16 %v1798, %v1796
    %v1883 = vpack.c.b16 %v1799, %v1797
    %v1884 = vpack.c.b16 %v1802, %v1800
    %v1885 = vpack.c.b16 %v1803, %v1801
    %v1886 = vpack.c.b16 %v1806, %v1804
    %v1887 = vpack.c.b16 %v1807, %v1805
    %v1888 = vpack.c.b16 %v1810, %v1808
    %v1889 = vpack.c.b16 %v1811, %v1809
    %v1890 = vpack.c.b16 %v1814, %v1812
    %v1891 = vpack.c.b16 %v1815, %v1813
    %v1892 = vpack.c.b16 %v1818, %v1816
    %v1893 = vpack.c.b16 %v1819, %v1817
    %v1894 = vpack.c.b16 %v1822, %v1820
    %v1895 = vpack.c.b16 %v1823, %v1821
    %v1896 = vpack.c.b16 %v1826, %v1824
    %v1897 = vpack.c.b16 %v1827, %v1825
    %v1898 = vpack.c.b16 %v1830, %v1828
    %v1899 = vpack.c.b16 %v1831, %v1829
    %v1900 = vpack.c.b16 %v1834, %v1832
    %v1901 = vpack.c.b16 %v1835, %v1833
    %v1902 = vpack.c.b16 %v1838, %v1836
    %v1903 = vpack.c.b16 %v1839, %v1837
    %1968 = vmatprep.subr.bf16.mxu0 %v1855
    %1969 = vmatpush1.bf16.msra.mxu0 %v1854
    %1970 = vmatprep.subr.bf16.mxu0 %v1853
    %1971 = vmatpush1.bf16.msra.mxu0 %v1852
    %1972 = vmatprep.subr.bf16.mxu0 %v1851
    %1973 = vmatpush1.bf16.msra.mxu0 %v1850
    %1974 = vmatprep.subr.bf16.mxu0 %v1849
    %1975 = vmatpush1.bf16.msra.mxu0 %v1848
    %1976 = vmatprep.subr.bf16.mxu0 %v1847
    %1977 = vmatpush1.bf16.msra.mxu0 %v1846
    %1978 = vmatprep.subr.bf16.mxu0 %v1845
    %1979 = vmatpush1.bf16.msra.mxu0 %v1844
    %1980 = vmatprep.subr.bf16.mxu0 %v1843
    %1981 = vmatpush1.bf16.msra.mxu0 %v1842
    %1982 = vmatprep.subr.bf16.mxu0 %v1841
    %1983 = vmatpush1.bf16.msra.mxu0 %v1840
    %1984 = vmatprep.subr.bf16.mxu0 %v1871
    %1985 = vmatpush2.bf16.msra.mxu0 %v1870
    %1986 = vmatprep.subr.bf16.mxu0 %v1869
    %1987 = vmatpush2.bf16.msra.mxu0 %v1868
    %1988 = vmatprep.subr.bf16.mxu0 %v1867
    %1989 = vmatpush2.bf16.msra.mxu0 %v1866
    %1990 = vmatprep.subr.bf16.mxu0 %v1865
    %1991 = vmatpush2.bf16.msra.mxu0 %v1864
    %1992 = vmatprep.subr.bf16.mxu0 %v1863
    %1993 = vmatpush2.bf16.msra.mxu0 %v1862
    %1994 = vmatprep.subr.bf16.mxu0 %v1861
    %1995 = vmatpush2.bf16.msra.mxu0 %v1860
    %1996 = vmatprep.subr.bf16.mxu0 %v1859
    %1997 = vmatpush2.bf16.msra.mxu0 %v1858
    %1998 = vmatprep.subr.bf16.mxu0 %v1857
    %1999 = vmatpush2.bf16.msra.mxu0 %v1856
    %2000 = vmatprep.mubr.bf16.mxu0 %v1569
    %2001 = vmatmul.mubr.bf16.gmra.mxu0 %v1568
    %v2002 = vpop.f32.mrf.mxu0
    %v2003 = vadd.f32 %v1641, %v2002
    %v2004 = vpop.f32.mrf.mxu0
    %v2005 = vadd.f32 %v1645, %v2004
    %v2006 = vpop.f32.mrf.mxu0
    %v2007 = vpop.f32.mrf.mxu0
    %2008 = vdwg.mxu0
    %2009 = vmatprep.subr.bf16.mxu0 %v1887
    %2010 = vmatpush1.bf16.msra.mxu0 %v1886
    %2011 = vmatprep.subr.bf16.mxu0 %v1885
    %2012 = vmatpush1.bf16.msra.mxu0 %v1884
    %2013 = vmatprep.subr.bf16.mxu0 %v1883
    %2014 = vmatpush1.bf16.msra.mxu0 %v1882
    %2015 = vmatprep.subr.bf16.mxu0 %v1881
    %2016 = vmatpush1.bf16.msra.mxu0 %v1880
    %2017 = vmatprep.subr.bf16.mxu0 %v1879
    %2018 = vmatpush1.bf16.msra.mxu0 %v1878
    %2019 = vmatprep.subr.bf16.mxu0 %v1877
    %2020 = vmatpush1.bf16.msra.mxu0 %v1876
    %2021 = vmatprep.subr.bf16.mxu0 %v1875
    %2022 = vmatpush1.bf16.msra.mxu0 %v1874
    %2023 = vmatprep.subr.bf16.mxu0 %v1873
    %2024 = vmatpush1.bf16.msra.mxu0 %v1872
    %2025 = vmatprep.subr.bf16.mxu0 %v1903
    %2026 = vmatpush2.bf16.msra.mxu0 %v1902
    %2027 = vmatprep.subr.bf16.mxu0 %v1901
    %2028 = vmatpush2.bf16.msra.mxu0 %v1900
    %2029 = vmatprep.subr.bf16.mxu0 %v1899
    %2030 = vmatpush2.bf16.msra.mxu0 %v1898
    %2031 = vmatprep.subr.bf16.mxu0 %v1897
    %2032 = vmatpush2.bf16.msra.mxu0 %v1896
    %2033 = vmatprep.subr.bf16.mxu0 %v1895
    %2034 = vmatpush2.bf16.msra.mxu0 %v1894
    %2035 = vmatprep.subr.bf16.mxu0 %v1893
    %2036 = vmatpush2.bf16.msra.mxu0 %v1892
    %2037 = vmatprep.subr.bf16.mxu0 %v1891
    %2038 = vmatpush2.bf16.msra.mxu0 %v1890
    %2039 = vmatprep.subr.bf16.mxu0 %v1889
    %2040 = vmatpush2.bf16.msra.mxu0 %v1888
    %2041 = vmatprep.mubr.bf16.mxu0 %v1571
    %2042 = vmatmul.mubr.bf16.gmra.mxu0 %v1570
    %v2043 = vpop.f32.mrf.mxu0
    %v2044 = vadd.f32 %v2003, %v2043
    %v2045 = vpop.f32.mrf.mxu0
    %v2046 = vadd.f32 %v2005, %v2045
    %v2047 = vpop.f32.mrf.mxu0
    %v2048 = vpop.f32.mrf.mxu0
    %2049 = vdwg.mxu0
    %v2050 = vmax.f32 %v2044, 0.0
    %v2051 = vmax.f32 %v2046, 0.0
    %2052 = vst [vmem:[%s7] sm:$0xff] %v2050
    %2053 = vst [vmem:[%s7 + $0x8] sm:$0xff] %v2051
    // Predicated region
    $region38: #{forward.1} parent=1 // pred_check
      _
    $region39: #{forward.1} parent=1 // pred_check_branch
      %2055 = sbr.rel (0) target = $region41
    $region40: #{forward.1} parent=1 // pred_region
      _
    $region41: #{forward.1} parent=1 // pred_fallthru
      _
    // Predicated region
    $region42: #{forward.1} parent=1 // pred_check
      _
    $region43: #{forward.1} parent=1 // pred_check_branch
      %2057 = sbr.rel (0) target = $region45
    $region44: #{forward.1} parent=1 // pred_region
      _
    $region45: #{forward.1} parent=1 // pred_fallthru
      _
    %2058 = vsyncpa [#allocation3], 1
    %2059 = vsyncpa [#allocation5], 1

</llo_original>
